<compile_context>
chip_gen: v5e
topology: v5e:2x2
jax: 0.10.0
libtpu: 0.0.40
codegen_flags: <defaults>
</compile_context>

<pallas_src>
import functools

import jax
import jax.numpy as jnp
from jax.experimental import pallas as pl
from jax.experimental.pallas import tpu as pltpu


def _round_up(x, m):
    return ((x + m - 1) // m) * m


def _cdiv(a, b):
    return -(-a // b)


# ----------------------------------------------------------------------------
# Pallas kernel: fused IC_VAE forward over one batch tile
# ----------------------------------------------------------------------------
def ic_vae_kernel(
    x_ref, eps_ref,
    w1_ref, w2_ref, wmu_ref, wlv_ref, w4_ref, w5_ref, w6_ref, wa1_ref,
    bias_ref,                       # all biases + aux (32,1) weight, packed f32
    out_ref,                        # (TB, OUT_W) f32: recon | mu | logvar | aux
    *, input_dim, latent_dim, out_width, bias_map, act_dtype,
):
    f32 = jnp.float32

    def bseg(name):
        off, width = bias_map[name]           # static, 128-aligned offsets
        return bias_ref[:, off:off + width]   # (1, width) f32

    def dense_act(h, w_ref, bname, relu=True):
        # MXU matmul with act_dtype operands, f32 accumulation; bias-add +
        # ReLU in act_dtype (bf16 on v6e/v7x halves vreg pressure of the
        # carried (TB,128)/(TB,64) activations).
        y = jnp.dot(h, w_ref[...], preferred_element_type=f32)
        y = y.astype(act_dtype) + bseg(bname).astype(act_dtype)
        return jnp.maximum(y, 0) if relu else y

    def dense_f32(h, w_ref, bname):
        # Heads whose results must stay f32 (mu, logvar, final logits).
        return jnp.dot(h, w_ref[...], preferred_element_type=f32) + bseg(bname)

    x = x_ref[...]                            # act_dtype (cast in the wrapper)
    eps = eps_ref[...]                        # f32

    # ---- encoder ----
    h = dense_act(x, w1_ref, "b1")
    h = dense_act(h, w2_ref, "b2")
    mu = dense_f32(h, wmu_ref, "bmu")         # (TB, latent) f32
    logvar = dense_f32(h, wlv_ref, "blv")     # (TB, latent) f32

    # ---- reparameterize: z = mu + eps * exp(0.5 * logvar)   (f32 EUP exp) ----
    z = mu + eps * jnp.exp(0.5 * logvar)

    # ---- decoder ----
    d = dense_act(z.astype(act_dtype), w4_ref, "b4")
    d = dense_act(d, w5_ref, "b5")
    logits = dense_f32(d, w6_ref, "b6")
    recon = jax.nn.sigmoid(logits)            # (TB, input_dim) f32

    # ---- aux head on mu: latent->32 on MXU, 32->1 as VPU mul + lane reduce ----
    a = dense_act(mu.astype(act_dtype), wa1_ref, "ba1")       # (TB, 32)
    a2 = (jnp.sum(a.astype(f32) * bseg("wa2"), axis=-1, keepdims=True)
          + bseg("ba2"))
    sig = jax.nn.sigmoid(a2)                  # (TB, 1) f32

    # ---- single lane-dense store: recon | mu | logvar | aux (the aux value is
    #      broadcast into the pad lanes so every concat piece is >1 lane). ----
    tb = recon.shape[0]
    tail = jnp.broadcast_to(sig, (tb, out_width - (input_dim + 2 * latent_dim)))
    out_ref[...] = jnp.concatenate([recon, mu, logvar, tail], axis=-1)


# ----------------------------------------------------------------------------
# Tile selection: big, megacore-even, sublane/packing aligned
# ----------------------------------------------------------------------------
def _choose_tile_b(batch, max_tile_b, megacore_tiles=2, align=16):
    """Largest batch tile <= max_tile_b such that the tile count is a multiple
    of `megacore_tiles` (v7x: 2 TCs) and the tile is `align`-row aligned
    (legal for both f32 and packed bf16 input blocks)."""
    if batch <= align * megacore_tiles:
        return batch                               # single full-batch tile
    ntiles = _cdiv(batch, max_tile_b)              # min tiles under the cap
    ntiles = megacore_tiles * _cdiv(ntiles, megacore_tiles)
    tile = _round_up(_cdiv(batch, ntiles), align)
    return min(tile, _round_up(max_tile_b, align))


# ----------------------------------------------------------------------------
# Wrapper
# ----------------------------------------------------------------------------
def ic_vae_forward(x, eps, params, *, tile_b=4096, compute_dtype=jnp.float32):
    """x: (B, input_dim) f32 in [0,1], eps: (B, latent_dim) f32 Gaussian noise.

    Returns (recon_x, mu, logvar, kl_weight), matching IC_VAE.forward.
    compute_dtype=jnp.bfloat16 selects the v6e/v7x fast path (bf16 matmul
    operands + bf16 hidden bias/ReLU, f32 accumulation and f32 outputs).
    Keep the f32 default on v5e.
    """
    B, input_dim = x.shape
    latent = eps.shape[1]
    act = jnp.dtype(compute_dtype)

    out_width = _round_up(input_dim + 2 * latent + 1, 128)

    # ---- pack all biases + the aux (32,1) weight into ONE f32 vector with
    #      128-lane-aligned segments (one operand / DMA / VMEM buffer). ----
    segs = [
        ("b1", params["b1"]), ("b2", params["b2"]),
        ("bmu", params["bmu"]), ("blv", params["blv"]),
        ("b4", params["b4"]), ("b5", params["b5"]),
        ("b6", params["b6"]), ("ba1", params["ba1"]),
        ("wa2", params["wa2"].T), ("ba2", params["ba2"]),
    ]
    bias_map, pieces, off = {}, [], 0
    for name, arr in segs:
        row = jnp.asarray(arr, jnp.float32).reshape(1, -1)
        width = row.shape[1]
        seg_w = _round_up(width, 128)
        pieces.append(jnp.pad(row, ((0, 0), (0, seg_w - width))))
        bias_map[name] = (off, width)
        off += seg_w
    bias_vec = jnp.concatenate(pieces, axis=1)             # (1, off) f32

    weights = [params[k].astype(act) for k in
               ("w1", "w2", "wmu", "wlv", "w4", "w5", "w6", "wa1")]
    operands = [x.astype(act), eps, *weights, bias_vec]     # x cast in wrapper

    # ---- batch tile: big, megacore-even, VMEM-budgeted ----
    TB = _choose_tile_b(B, tile_b)
    resident = sum(int(op.size) * op.dtype.itemsize for op in operands[2:])

    def vmem_bytes(tb):
        io = tb * (input_dim * act.itemsize + latent * 4 + out_width * 4)
        scratch = 6 * tb * 128 * act.itemsize               # live activations
        return resident + 2 * io + scratch                  # 2x = double-buffer

    VMEM_BUDGET = 40 * 1024 * 1024          # conservative across v5e/v6e/v7x
    while TB > 16 and vmem_bytes(TB) > VMEM_BUDGET:
        TB = _round_up(max(16, TB // 2), 16)
    num_tiles = _cdiv(B, TB)
    vmem_limit = int(min(48 * 1024 * 1024,
                         max(32 * 1024 * 1024, 2 * vmem_bytes(TB))))

    def tile_spec(feat):
        return pl.BlockSpec((TB, feat), lambda i: (i, 0))

    def resident_spec(arr):
        # Full-array block + constant index map -> DMA'd once, VMEM-resident.
        return pl.BlockSpec(arr.shape, lambda i: (0, 0))

    in_specs = [tile_spec(input_dim), tile_spec(latent)]
    in_specs += [resident_spec(op) for op in operands[2:]]

    kernel = functools.partial(
        ic_vae_kernel, input_dim=input_dim, latent_dim=latent,
        out_width=out_width, bias_map=bias_map, act_dtype=act)

    out = pl.pallas_call(
        kernel,
        grid=(num_tiles,),
        in_specs=in_specs,
        out_specs=tile_spec(out_width),
        out_shape=jax.ShapeDtypeStruct((B, out_width), jnp.float32),
        compiler_params=pltpu.CompilerParams(
            dimension_semantics=("parallel",),
            vmem_limit_bytes=vmem_limit),
    )(*operands)

    recon = out[:, :input_dim]
    mu = out[:, input_dim:input_dim + latent]
    logvar = out[:, input_dim + latent:input_dim + 2 * latent]
    kl_weight = jnp.mean(out[:, input_dim + 2 * latent])
    return recon, mu, logvar, kl_weight


# ----------------------------------------------------------------------------
# Deterministic parameter initialization (PyTorch-Linear-style uniform bounds)
# ----------------------------------------------------------------------------
def init_params(key, input_dim, latent_dim):
    dims = {
        "w1": (input_dim, 128), "b1": (1, 128),
        "w2": (128, 64), "b2": (1, 64),
        "wmu": (64, latent_dim), "bmu": (1, latent_dim),
        "wlv": (64, latent_dim), "blv": (1, latent_dim),
        "w4": (latent_dim, 64), "b4": (1, 64),
        "w5": (64, 128), "b5": (1, 128),
        "w6": (128, input_dim), "b6": (1, input_dim),
        "wa1": (latent_dim, 32), "ba1": (1, 32),
        "wa2": (32, 1), "ba2": (1, 1),
    }
    params = {}
    keys = jax.random.split(key, len(dims))
    for (name, shape), k in zip(dims.items(), keys):
        fan_in = shape[0] if name.startswith("w") else shape[1]
        bound = 1.0 / jnp.sqrt(jnp.float32(fan_in))
        params[name] = jax.random.uniform(
            k, shape, jnp.float32, minval=-bound, maxval=bound)
    return params


# ----------------------------------------------------------------------------
# Pure-JAX reference (same cast points as the kernel) for correctness checks
# ----------------------------------------------------------------------------
def ic_vae_reference(x, eps, p, compute_dtype=jnp.float32):
    act = jnp.dtype(compute_dtype)
    f32 = jnp.float32

    def dense_act(h, w, b, relu=True):
        y = jnp.dot(h.astype(act), w.astype(act), preferred_element_type=f32)
        y = y.astype(act) + b.astype(act)
        return jnp.maximum(y, 0) if relu else y

    def dense_f32(h, w, b):
        return jnp.dot(h.astype(act), w.astype(act),
                       preferred_element_type=f32) + b

    h = dense_act(x, p["w1"], p["b1"])
    h = dense_act(h, p["w2"], p["b2"])
    mu = dense_f32(h, p["wmu"], p["bmu"])
    logvar = dense_f32(h, p["wlv"], p["blv"])
    z = mu + eps * jnp.exp(0.5 * logvar)
    d = dense_act(z, p["w4"], p["b4"])
    d = dense_act(d, p["w5"], p["b5"])
    recon = jax.nn.sigmoid(dense_f32(d, p["w6"], p["b6"]))
    a = dense_act(mu, p["wa1"], p["ba1"])
    a2 = a.astype(f32) @ p["wa2"] + p["ba2"]
    kl_w = jnp.mean(jax.nn.sigmoid(a2))
    return recon, mu, logvar, kl_w


if __name__ == "__main__":
    INPUT_DIM = 32
    LATENT_DIM = 8
    B = 272            # multi-tile grids below; last tile partial

    key = jax.random.PRNGKey(0)
    k_x, k_eps, k_p = jax.random.split(key, 3)
    x = jax.random.uniform(k_x, (B, INPUT_DIM), jnp.float32)       # BCE-style data in [0,1]
    eps = jax.random.normal(k_eps, (B, LATENT_DIM), jnp.float32)   # reparam noise
    params = init_params(k_p, INPUT_DIM, LATENT_DIM)

    r_recon, r_mu, r_logvar, r_klw = ic_vae_reference(x, eps, params)

    # f32 path, small tile -> 4 tiles, last one partial (exercises clipping)
    recon, mu, logvar, kl_w = ic_vae_forward(x, eps, params, tile_b=80)
    jax.block_until_ready((recon, mu, logvar, kl_w))
    assert jnp.allclose(recon, r_recon, atol=1e-5, rtol=1e-5)
    assert jnp.allclose(mu, r_mu, atol=1e-5, rtol=1e-5)
    assert jnp.allclose(logvar, r_logvar, atol=1e-5, rtol=1e-5)
    assert jnp.allclose(kl_w, r_klw, atol=1e-5, rtol=1e-5)

    # f32 path, default large tile -> 2 balanced tiles (v7x megacore even split)
    recon2, mu2, logvar2, kl2 = ic_vae_forward(x, eps, params)
    jax.block_until_ready((recon2, mu2, logvar2, kl2))
    assert jnp.allclose(recon2, r_recon, atol=1e-5, rtol=1e-5)
    assert jnp.allclose(mu2, r_mu, atol=1e-5, rtol=1e-5)
    assert jnp.allclose(logvar2, r_logvar, atol=1e-5, rtol=1e-5)
    assert jnp.allclose(kl2, r_klw, atol=1e-5, rtol=1e-5)

    # bf16 activation path (v6e/v7x fast path; f32 accumulation + f32 outputs)
    recon_b, mu_b, logvar_b, kl_b = ic_vae_forward(
        x, eps, params, tile_b=144, compute_dtype=jnp.bfloat16)
    jax.block_until_ready((recon_b, mu_b, logvar_b, kl_b))
    rb_recon, rb_mu, rb_logvar, rb_klw = ic_vae_reference(
        x, eps, params, compute_dtype=jnp.bfloat16)
    assert jnp.allclose(recon_b, rb_recon, atol=2e-2, rtol=2e-2)
    assert jnp.allclose(mu_b, rb_mu, atol=2e-2, rtol=2e-2)
    assert jnp.allclose(logvar_b, rb_logvar, atol=2e-2, rtol=2e-2)
    assert jnp.allclose(kl_b, rb_klw, atol=2e-2, rtol=2e-2)

    print("KERNEL_OK")
</pallas_src>

<mosaic_0001>
module attributes {stable_mosaic.version = 11 : i64} {
  func.func @ic_vae_kernel(%arg0: i32, %arg1: memref<80x32xf32, #tpu.memory_space<vmem>>, %arg2: memref<80x8xf32, #tpu.memory_space<vmem>>, %arg3: memref<32x128xf32, #tpu.memory_space<vmem>>, %arg4: memref<128x64xf32, #tpu.memory_space<vmem>>, %arg5: memref<64x8xf32, #tpu.memory_space<vmem>>, %arg6: memref<64x8xf32, #tpu.memory_space<vmem>>, %arg7: memref<8x64xf32, #tpu.memory_space<vmem>>, %arg8: memref<64x128xf32, #tpu.memory_space<vmem>>, %arg9: memref<128x32xf32, #tpu.memory_space<vmem>>, %arg10: memref<8x32xf32, #tpu.memory_space<vmem>>, %arg11: memref<1x1280xf32, #tpu.memory_space<vmem>>, %arg12: memref<80x128xf32, #tpu.memory_space<vmem>>) attributes {dimension_semantics = [#tpu.dimension_semantics<parallel>], iteration_bounds = array<i64: 4>, scalar_prefetch = 0 : i64, scratch_operands = 0 : i64, tpu.core_type = #tpu.core_type<tc>, window_params = [{transform_indices = @transform_0, window_bounds = array<i64: 80, 32>}, {transform_indices = @transform_1, window_bounds = array<i64: 80, 8>}, {pipeline_mode = #tpu.pipeline_mode<synchronous>, transform_indices = @transform_2, window_bounds = array<i64: 32, 128>}, {pipeline_mode = #tpu.pipeline_mode<synchronous>, transform_indices = @transform_3, window_bounds = array<i64: 128, 64>}, {pipeline_mode = #tpu.pipeline_mode<synchronous>, transform_indices = @transform_4, window_bounds = array<i64: 64, 8>}, {pipeline_mode = #tpu.pipeline_mode<synchronous>, transform_indices = @transform_5, window_bounds = array<i64: 64, 8>}, {pipeline_mode = #tpu.pipeline_mode<synchronous>, transform_indices = @transform_6, window_bounds = array<i64: 8, 64>}, {pipeline_mode = #tpu.pipeline_mode<synchronous>, transform_indices = @transform_7, window_bounds = array<i64: 64, 128>}, {pipeline_mode = #tpu.pipeline_mode<synchronous>, transform_indices = @transform_8, window_bounds = array<i64: 128, 32>}, {pipeline_mode = #tpu.pipeline_mode<synchronous>, transform_indices = @transform_9, window_bounds = array<i64: 8, 32>}, {pipeline_mode = #tpu.pipeline_mode<synchronous>, transform_indices = @transform_10, window_bounds = array<i64: 1, 1280>}, {transform_indices = @transform_11, window_bounds = array<i64: 80, 128>}]} {
    %c0 = arith.constant 0 : index
    %c0_0 = arith.constant 0 : index
    %0 = vector.load %arg1[%c0, %c0_0] : memref<80x32xf32, #tpu.memory_space<vmem>>, vector<80x32xf32>
    %c0_1 = arith.constant 0 : index
    %c0_2 = arith.constant 0 : index
    %1 = vector.load %arg2[%c0_1, %c0_2] : memref<80x8xf32, #tpu.memory_space<vmem>>, vector<80x8xf32>
    %c0_3 = arith.constant 0 : index
    %c0_4 = arith.constant 0 : index
    %2 = vector.load %arg3[%c0_3, %c0_4] : memref<32x128xf32, #tpu.memory_space<vmem>>, vector<32x128xf32>
    %cst = arith.constant dense<0.000000e+00> : vector<80x128xf32>
    %3 = tpu.matmul %0, %2, %cst {dimension_numbers = #tpu.dot_dimension_numbers<[1], [0], [0], [1], [0, 0, 1, 1], [], []>} : vector<80x32xf32>, vector<32x128xf32>, vector<80x128xf32> -> vector<80x128xf32>
    %c0_5 = arith.constant 0 : index
    %c0_6 = arith.constant 0 : index
    %4 = vector.load %arg11[%c0_5, %c0_6] : memref<1x1280xf32, #tpu.memory_space<vmem>>, vector<1x128xf32>
    %5 = vector.broadcast %4 : vector<1x128xf32> to vector<80x128xf32>
    %6 = arith.addf %3, %5 : vector<80x128xf32>
    %cst_7 = arith.constant 0.000000e+00 : f32
    %7 = vector.broadcast %cst_7 : f32 to vector<80x128xf32>
    %8 = arith.maximumf %6, %7 : vector<80x128xf32>
    %c0_8 = arith.constant 0 : index
    %c0_9 = arith.constant 0 : index
    %9 = vector.load %arg4[%c0_8, %c0_9] : memref<128x64xf32, #tpu.memory_space<vmem>>, vector<128x64xf32>
    %cst_10 = arith.constant dense<0.000000e+00> : vector<80x64xf32>
    %10 = tpu.matmul %8, %9, %cst_10 {dimension_numbers = #tpu.dot_dimension_numbers<[1], [0], [0], [1], [0, 0, 1, 1], [], []>} : vector<80x128xf32>, vector<128x64xf32>, vector<80x64xf32> -> vector<80x64xf32>
    %c0_11 = arith.constant 0 : index
    %c128 = arith.constant 128 : index
    %11 = vector.load %arg11[%c0_11, %c128] : memref<1x1280xf32, #tpu.memory_space<vmem>>, vector<1x64xf32>
    %12 = vector.broadcast %11 : vector<1x64xf32> to vector<80x64xf32>
    %13 = arith.addf %10, %12 : vector<80x64xf32>
    %cst_12 = arith.constant 0.000000e+00 : f32
    %14 = vector.broadcast %cst_12 : f32 to vector<80x64xf32>
    %15 = arith.maximumf %13, %14 : vector<80x64xf32>
    %c0_13 = arith.constant 0 : index
    %c0_14 = arith.constant 0 : index
    %16 = vector.load %arg5[%c0_13, %c0_14] : memref<64x8xf32, #tpu.memory_space<vmem>>, vector<64x8xf32>
    %cst_15 = arith.constant dense<0.000000e+00> : vector<80x8xf32>
    %17 = tpu.matmul %15, %16, %cst_15 {dimension_numbers = #tpu.dot_dimension_numbers<[1], [0], [0], [1], [0, 0, 1, 1], [], []>} : vector<80x64xf32>, vector<64x8xf32>, vector<80x8xf32> -> vector<80x8xf32>
    %c0_16 = arith.constant 0 : index
    %c256 = arith.constant 256 : index
    %18 = vector.load %arg11[%c0_16, %c256] : memref<1x1280xf32, #tpu.memory_space<vmem>>, vector<1x8xf32>
    %19 = vector.broadcast %18 : vector<1x8xf32> to vector<80x8xf32>
    %20 = arith.addf %17, %19 : vector<80x8xf32>
    %c0_17 = arith.constant 0 : index
    %c0_18 = arith.constant 0 : index
    %21 = vector.load %arg6[%c0_17, %c0_18] : memref<64x8xf32, #tpu.memory_space<vmem>>, vector<64x8xf32>
    %cst_19 = arith.constant dense<0.000000e+00> : vector<80x8xf32>
    %22 = tpu.matmul %15, %21, %cst_19 {dimension_numbers = #tpu.dot_dimension_numbers<[1], [0], [0], [1], [0, 0, 1, 1], [], []>} : vector<80x64xf32>, vector<64x8xf32>, vector<80x8xf32> -> vector<80x8xf32>
    %c0_20 = arith.constant 0 : index
    %c384 = arith.constant 384 : index
    %23 = vector.load %arg11[%c0_20, %c384] : memref<1x1280xf32, #tpu.memory_space<vmem>>, vector<1x8xf32>
    %24 = vector.broadcast %23 : vector<1x8xf32> to vector<80x8xf32>
    %25 = arith.addf %22, %24 : vector<80x8xf32>
    %cst_21 = arith.constant 5.000000e-01 : f32
    %26 = vector.broadcast %cst_21 : f32 to vector<80x8xf32>
    %27 = arith.mulf %26, %25 : vector<80x8xf32>
    %28 = math.exp %27 : vector<80x8xf32>
    %29 = arith.mulf %1, %28 : vector<80x8xf32>
    %30 = arith.addf %20, %29 : vector<80x8xf32>
    %c0_22 = arith.constant 0 : index
    %c0_23 = arith.constant 0 : index
    %31 = vector.load %arg7[%c0_22, %c0_23] : memref<8x64xf32, #tpu.memory_space<vmem>>, vector<8x64xf32>
    %cst_24 = arith.constant dense<0.000000e+00> : vector<80x64xf32>
    %32 = tpu.matmul %30, %31, %cst_24 {dimension_numbers = #tpu.dot_dimension_numbers<[1], [0], [0], [1], [0, 0, 1, 1], [], []>} : vector<80x8xf32>, vector<8x64xf32>, vector<80x64xf32> -> vector<80x64xf32>
    %c0_25 = arith.constant 0 : index
    %c512 = arith.constant 512 : index
    %33 = vector.load %arg11[%c0_25, %c512] : memref<1x1280xf32, #tpu.memory_space<vmem>>, vector<1x64xf32>
    %34 = vector.broadcast %33 : vector<1x64xf32> to vector<80x64xf32>
    %35 = arith.addf %32, %34 : vector<80x64xf32>
    %cst_26 = arith.constant 0.000000e+00 : f32
    %36 = vector.broadcast %cst_26 : f32 to vector<80x64xf32>
    %37 = arith.maximumf %35, %36 : vector<80x64xf32>
    %c0_27 = arith.constant 0 : index
    %c0_28 = arith.constant 0 : index
    %38 = vector.load %arg8[%c0_27, %c0_28] : memref<64x128xf32, #tpu.memory_space<vmem>>, vector<64x128xf32>
    %cst_29 = arith.constant dense<0.000000e+00> : vector<80x128xf32>
    %39 = tpu.matmul %37, %38, %cst_29 {dimension_numbers = #tpu.dot_dimension_numbers<[1], [0], [0], [1], [0, 0, 1, 1], [], []>} : vector<80x64xf32>, vector<64x128xf32>, vector<80x128xf32> -> vector<80x128xf32>
    %c0_30 = arith.constant 0 : index
    %c640 = arith.constant 640 : index
    %40 = vector.load %arg11[%c0_30, %c640] : memref<1x1280xf32, #tpu.memory_space<vmem>>, vector<1x128xf32>
    %41 = vector.broadcast %40 : vector<1x128xf32> to vector<80x128xf32>
    %42 = arith.addf %39, %41 : vector<80x128xf32>
    %cst_31 = arith.constant 0.000000e+00 : f32
    %43 = vector.broadcast %cst_31 : f32 to vector<80x128xf32>
    %44 = arith.maximumf %42, %43 : vector<80x128xf32>
    %c0_32 = arith.constant 0 : index
    %c0_33 = arith.constant 0 : index
    %45 = vector.load %arg9[%c0_32, %c0_33] : memref<128x32xf32, #tpu.memory_space<vmem>>, vector<128x32xf32>
    %cst_34 = arith.constant dense<0.000000e+00> : vector<80x32xf32>
    %46 = tpu.matmul %44, %45, %cst_34 {dimension_numbers = #tpu.dot_dimension_numbers<[1], [0], [0], [1], [0, 0, 1, 1], [], []>} : vector<80x128xf32>, vector<128x32xf32>, vector<80x32xf32> -> vector<80x32xf32>
    %c0_35 = arith.constant 0 : index
    %c768 = arith.constant 768 : index
    %47 = vector.load %arg11[%c0_35, %c768] : memref<1x1280xf32, #tpu.memory_space<vmem>>, vector<1x32xf32>
    %48 = vector.broadcast %47 : vector<1x32xf32> to vector<80x32xf32>
    %49 = arith.addf %46, %48 : vector<80x32xf32>
    %50 = arith.negf %49 : vector<80x32xf32>
    %51 = math.exp %50 : vector<80x32xf32>
    %cst_36 = arith.constant 1.000000e+00 : f32
    %52 = vector.broadcast %cst_36 : f32 to vector<80x32xf32>
    %53 = arith.addf %52, %51 : vector<80x32xf32>
    %54 = arith.divf %52, %53 : vector<80x32xf32>
    %c0_37 = arith.constant 0 : index
    %c0_38 = arith.constant 0 : index
    %55 = vector.load %arg10[%c0_37, %c0_38] : memref<8x32xf32, #tpu.memory_space<vmem>>, vector<8x32xf32>
    %cst_39 = arith.constant dense<0.000000e+00> : vector<80x32xf32>
    %56 = tpu.matmul %20, %55, %cst_39 {dimension_numbers = #tpu.dot_dimension_numbers<[1], [0], [0], [1], [0, 0, 1, 1], [], []>} : vector<80x8xf32>, vector<8x32xf32>, vector<80x32xf32> -> vector<80x32xf32>
    %c0_40 = arith.constant 0 : index
    %c896 = arith.constant 896 : index
    %57 = vector.load %arg11[%c0_40, %c896] : memref<1x1280xf32, #tpu.memory_space<vmem>>, vector<1x32xf32>
    %58 = vector.broadcast %57 : vector<1x32xf32> to vector<80x32xf32>
    %59 = arith.addf %56, %58 : vector<80x32xf32>
    %cst_41 = arith.constant 0.000000e+00 : f32
    %60 = vector.broadcast %cst_41 : f32 to vector<80x32xf32>
    %61 = arith.maximumf %59, %60 : vector<80x32xf32>
    %c0_42 = arith.constant 0 : index
    %c1024 = arith.constant 1024 : index
    %62 = vector.load %arg11[%c0_42, %c1024] : memref<1x1280xf32, #tpu.memory_space<vmem>>, vector<1x32xf32>
    %63 = vector.broadcast %62 : vector<1x32xf32> to vector<80x32xf32>
    %64 = arith.mulf %61, %63 : vector<80x32xf32>
    %cst_43 = arith.constant dense<0.000000e+00> : vector<80xf32>
    %65 = vector.multi_reduction <add>, %64, %cst_43 [1] : vector<80x32xf32> to vector<80xf32>
    %66 = vector.shape_cast %65 : vector<80xf32> to vector<80x1xf32>
    %c0_44 = arith.constant 0 : index
    %c1152 = arith.constant 1152 : index
    %67 = vector.load %arg11[%c0_44, %c1152] : memref<1x1280xf32, #tpu.memory_space<vmem>>, vector<1x1xf32>
    %68 = vector.broadcast %67 : vector<1x1xf32> to vector<80x1xf32>
    %69 = arith.addf %66, %68 : vector<80x1xf32>
    %70 = arith.negf %69 : vector<80x1xf32>
    %71 = math.exp %70 : vector<80x1xf32>
    %cst_45 = arith.constant 1.000000e+00 : f32
    %72 = vector.broadcast %cst_45 : f32 to vector<80x1xf32>
    %73 = arith.addf %72, %71 : vector<80x1xf32>
    %74 = arith.divf %72, %73 : vector<80x1xf32>
    %75 = vector.shape_cast %74 : vector<80x1xf32> to vector<80x1xf32>
    %76 = vector.broadcast %75 : vector<80x1xf32> to vector<80x80xf32>
    %77 = tpu.concatenate %54, %20, %25, %76 in 1 : vector<80x32xf32>, vector<80x8xf32>, vector<80x8xf32>, vector<80x80xf32> -> vector<80x128xf32>
    %c0_46 = arith.constant 0 : index
    %c0_47 = arith.constant 0 : index
    %78 = vector.load %arg12[%c0_46, %c0_47] : memref<80x128xf32, #tpu.memory_space<vmem>>, vector<80x128xf32>
    tpu.vector_store %arg12[%c0_46, %c0_47], %77 {strides = array<i32>} : memref<80x128xf32, #tpu.memory_space<vmem>>, vector<80x128xf32>,
    return
  }
  func.func @transform_0(%arg0: i32) -> (i32, i32) {
    %c0_i32 = arith.constant 0 : i32
    %c0_i32_0 = arith.constant 0 : i32
    return %arg0, %c0_i32 : i32, i32
  }
  func.func @transform_1(%arg0: i32) -> (i32, i32) {
    %c0_i32 = arith.constant 0 : i32
    %c0_i32_0 = arith.constant 0 : i32
    return %arg0, %c0_i32 : i32, i32
  }
  func.func @transform_2(%arg0: i32) -> (i32, i32) {
    %c0_i32 = arith.constant 0 : i32
    %c0_i32_0 = arith.constant 0 : i32
    %c0_i32_1 = arith.constant 0 : i32
    return %c0_i32, %c0_i32_0 : i32, i32
  }
  func.func @transform_3(%arg0: i32) -> (i32, i32) {
    %c0_i32 = arith.constant 0 : i32
    %c0_i32_0 = arith.constant 0 : i32
    %c0_i32_1 = arith.constant 0 : i32
    return %c0_i32, %c0_i32_0 : i32, i32
  }
  func.func @transform_4(%arg0: i32) -> (i32, i32) {
    %c0_i32 = arith.constant 0 : i32
    %c0_i32_0 = arith.constant 0 : i32
    %c0_i32_1 = arith.constant 0 : i32
    return %c0_i32, %c0_i32_0 : i32, i32
  }
  func.func @transform_5(%arg0: i32) -> (i32, i32) {
    %c0_i32 = arith.constant 0 : i32
    %c0_i32_0 = arith.constant 0 : i32
    %c0_i32_1 = arith.constant 0 : i32
    return %c0_i32, %c0_i32_0 : i32, i32
  }
  func.func @transform_6(%arg0: i32) -> (i32, i32) {
    %c0_i32 = arith.constant 0 : i32
    %c0_i32_0 = arith.constant 0 : i32
    %c0_i32_1 = arith.constant 0 : i32
    return %c0_i32, %c0_i32_0 : i32, i32
  }
  func.func @transform_7(%arg0: i32) -> (i32, i32) {
    %c0_i32 = arith.constant 0 : i32
    %c0_i32_0 = arith.constant 0 : i32
    %c0_i32_1 = arith.constant 0 : i32
    return %c0_i32, %c0_i32_0 : i32, i32
  }
  func.func @transform_8(%arg0: i32) -> (i32, i32) {
    %c0_i32 = arith.constant 0 : i32
    %c0_i32_0 = arith.constant 0 : i32
    %c0_i32_1 = arith.constant 0 : i32
    return %c0_i32, %c0_i32_0 : i32, i32
  }
  func.func @transform_9(%arg0: i32) -> (i32, i32) {
    %c0_i32 = arith.constant 0 : i32
    %c0_i32_0 = arith.constant 0 : i32
    %c0_i32_1 = arith.constant 0 : i32
    return %c0_i32, %c0_i32_0 : i32, i32
  }
  func.func @transform_10(%arg0: i32) -> (i32, i32) {
    %c0_i32 = arith.constant 0 : i32
    %c0_i32_0 = arith.constant 0 : i32
    %c0_i32_1 = arith.constant 0 : i32
    return %c0_i32, %c0_i32_0 : i32, i32
  }
  func.func @transform_11(%arg0: i32) -> (i32, i32) {
    %c0_i32 = arith.constant 0 : i32
    %c0_i32_0 = arith.constant 0 : i32
    return %arg0, %c0_i32 : i32, i32
  }
}

</mosaic_0001>

<llo_original>
// kernel: tpu_custom_call.1
$region0: #{tpu_custom_call.1}
  #allocation0 [shape = 'u32[]', space=smem, size = 0x4, offset = 0x4, fixed_abs, tag = 'smem constant byte address 0x4 - core index']
  #allocation1 [shape = 'u32[72,128]{1,0:T(1,128)}', space=vmem, size = 0x9000, scoped, tag = 'internal scratch']
  %s0 = inlined_call_operand.vmem [shape: f32[272,32], index: 0, kind: input, shape index: {}]
  %s1 = inlined_call_operand.vmem [shape: f32[272,8], index: 1, kind: input, shape index: {}]
  %s2 = inlined_call_operand.vmem [shape: f32[32,128], index: 2, kind: input, shape index: {}]
  %s3 = inlined_call_operand.vmem [shape: f32[128,64], index: 3, kind: input, shape index: {}]
  %s4 = inlined_call_operand.vmem [shape: f32[64,8], index: 4, kind: input, shape index: {}]
  %s5 = inlined_call_operand.vmem [shape: f32[64,8], index: 5, kind: input, shape index: {}]
  %s6 = inlined_call_operand.vmem [shape: f32[8,64], index: 6, kind: input, shape index: {}]
  %s7 = inlined_call_operand.vmem [shape: f32[64,128], index: 7, kind: input, shape index: {}]
  %s8 = inlined_call_operand.vmem [shape: f32[128,32], index: 8, kind: input, shape index: {}]
  %s9 = inlined_call_operand.vmem [shape: f32[8,32], index: 9, kind: input, shape index: {}]
  %s10 = inlined_call_operand.vmem [shape: f32[1,1280], index: 10, kind: input, shape index: {}]
  %s11 = inlined_call_operand.hbm [shape: f32[272,128], index: 11, kind: output, shape index: {}]
  %s12 = sld [smem:[#allocation0]]
  $region77: #{tpu_custom_call.1} parent=0
    _
  %s14 = ssub.s32 1, %s12
  %s15 = scalar_select 0, %s14, %s12
  $region1: #{tpu_custom_call.1} parent=0
    #allocation2 [shape = 'u8[81920]{0}', space=vmem, size = 0x14000, scoped, tag = 'output window, operand 0']
    #allocation3 [shape = 's32[2]{0}', space=sflag, size = 0x8, scoped, tag = 'scoped memory for tpu_custom_call.1']
    %16 = vsyncpa [#allocation3], 0
    %s17 = scalar_lea.sflag [#allocation3], 1
    %18 = vsyncpa %s17, 0
    loop: start=0, step=1, limit=6
    $region2: #{tpu_custom_call.1} parent=1 // loop_pre_header
      _
    $region3: #{tpu_custom_call.1} parent=1 // loop_header
      %s20 = sphi 0, %s24
      %p21 = scmp.ge.s32.totalorder %s20, 6
      %s30 = sphi 0, %s32
      %s33 = sphi 0, %s30
      %s34 = sphi 0, %s33
      %s50 = sphi 0, %s34
      %s56 = sphi 0, %s58
      %s59 = sphi 0, %s56
      %s60 = sphi 0, %s59
      %s76 = sphi 0, %s60
      %s80 = sphi 0, %s80
      %s82 = sphi 0, %s80
      %s83 = sphi 0, %s82
      %s97 = sphi 0, %s83
      %s101 = sphi 0, %s101
      %s103 = sphi 0, %s101
      %s104 = sphi 0, %s103
      %s118 = sphi 0, %s104
      %s122 = sphi 0, %s122
      %s124 = sphi 0, %s122
      %s125 = sphi 0, %s124
      %s139 = sphi 0, %s125
      %s143 = sphi 0, %s143
      %s145 = sphi 0, %s143
      %s146 = sphi 0, %s145
      %s160 = sphi 0, %s146
      %s164 = sphi 0, %s164
      %s166 = sphi 0, %s164
      %s167 = sphi 0, %s166
      %s181 = sphi 0, %s167
      %s185 = sphi 0, %s185
      %s187 = sphi 0, %s185
      %s188 = sphi 0, %s187
      %s202 = sphi 0, %s188
      %s206 = sphi 0, %s206
      %s208 = sphi 0, %s206
      %s209 = sphi 0, %s208
      %s223 = sphi 0, %s209
      %s227 = sphi 0, %s227
      %s229 = sphi 0, %s227
      %s230 = sphi 0, %s229
      %s244 = sphi 0, %s230
      %s248 = sphi 0, %s248
      %s250 = sphi 0, %s248
      %s251 = sphi 0, %s250
      %s265 = sphi 0, %s251
      %s271 = sphi 0, %s273
      %s274 = sphi 0, %s271
      %s275 = sphi 0, %s274
      %s291 = sphi 0, %s275
    $region4: #{tpu_custom_call.1} parent=1 // loop_header_branch
      %23 = sbr.rel (%p21) target = $region8
    $region5: #{tpu_custom_call.1} parent=1 // loop_body
      %s25 = ssub.s32 %s20, 1
      %s26 = ssub.s32 %s20, 2
      %s27 = sadd.s32 %s20, 1
      %s28 = ssub.s32 %s20, %s27
      %p29 = scmp.eq.s32.totalorder %s28, 0
      %s31 = sadd.s32 %s30, 1
      %s32 = scalar_select %p29, %s30, %s31
      %p35 = pneg %p29
      %p36 = scmp.eq.s32.totalorder %s20, 3
      %p37 = por %p35, %p36
      %p38 = scmp.ne.s32.totalorder %s30, %s33
      %p39 = scmp.eq.s32.totalorder %s20, 0
      %p40 = por %p38, %p39
      %p41 = scmp.ne.s32.totalorder %s30, %s33
      %p42 = scmp.eq.s32.totalorder %s25, 3
      %p43 = por %p41, %p42
      %p44 = scmp.ne.s32.totalorder %s33, %s34
      %p45 = scmp.eq.s32.totalorder %s25, 0
      %p46 = por %p44, %p45
      %p47 = scmp.ne.s32.totalorder %s33, %s34
      %p48 = scmp.eq.s32.totalorder %s26, 3
      %p49 = por %p47, %p48
      %p51 = scmp.ne.s32.totalorder %s34, %s50
      %p52 = scmp.eq.s32.totalorder %s26, 0
      %p53 = por %p51, %p52
      %s54 = ssub.s32 %s20, %s27
      %p55 = scmp.eq.s32.totalorder %s54, 0
      %s57 = sadd.s32 %s56, 1
      %s58 = scalar_select %p55, %s56, %s57
      %p61 = pneg %p55
      %p62 = scmp.eq.s32.totalorder %s20, 3
      %p63 = por %p61, %p62
      %p64 = scmp.ne.s32.totalorder %s56, %s59
      %p65 = scmp.eq.s32.totalorder %s20, 0
      %p66 = por %p64, %p65
      %p67 = scmp.ne.s32.totalorder %s56, %s59
      %p68 = scmp.eq.s32.totalorder %s25, 3
      %p69 = por %p67, %p68
      %p70 = scmp.ne.s32.totalorder %s59, %s60
      %p71 = scmp.eq.s32.totalorder %s25, 0
      %p72 = por %p70, %p71
      %p73 = scmp.ne.s32.totalorder %s59, %s60
      %p74 = scmp.eq.s32.totalorder %s26, 3
      %p75 = por %p73, %p74
      %p77 = scmp.ne.s32.totalorder %s60, %s76
      %p78 = scmp.eq.s32.totalorder %s26, 0
      %p79 = por %p77, %p78
      %s81 = sadd.s32 %s80, 1
      %p84 = scmp.eq.s32.totalorder %s20, 3
      %p85 = scmp.ne.s32.totalorder %s80, %s82
      %p86 = scmp.eq.s32.totalorder %s20, 0
      %p87 = por %p85, %p86
      %p88 = scmp.ne.s32.totalorder %s80, %s82
      %p89 = scmp.eq.s32.totalorder %s25, 3
      %p90 = por %p88, %p89
      %p91 = scmp.ne.s32.totalorder %s82, %s83
      %p92 = scmp.eq.s32.totalorder %s25, 0
      %p93 = por %p91, %p92
      %p94 = scmp.ne.s32.totalorder %s82, %s83
      %p95 = scmp.eq.s32.totalorder %s26, 3
      %p96 = por %p94, %p95
      %p98 = scmp.ne.s32.totalorder %s83, %s97
      %p99 = scmp.eq.s32.totalorder %s26, 0
      %p100 = por %p98, %p99
      %s102 = sadd.s32 %s101, 1
      %p105 = scmp.eq.s32.totalorder %s20, 3
      %p106 = scmp.ne.s32.totalorder %s101, %s103
      %p107 = scmp.eq.s32.totalorder %s20, 0
      %p108 = por %p106, %p107
      %p109 = scmp.ne.s32.totalorder %s101, %s103
      %p110 = scmp.eq.s32.totalorder %s25, 3
      %p111 = por %p109, %p110
      %p112 = scmp.ne.s32.totalorder %s103, %s104
      %p113 = scmp.eq.s32.totalorder %s25, 0
      %p114 = por %p112, %p113
      %p115 = scmp.ne.s32.totalorder %s103, %s104
      %p116 = scmp.eq.s32.totalorder %s26, 3
      %p117 = por %p115, %p116
      %p119 = scmp.ne.s32.totalorder %s104, %s118
      %p120 = scmp.eq.s32.totalorder %s26, 0
      %p121 = por %p119, %p120
      %s123 = sadd.s32 %s122, 1
      %p126 = scmp.eq.s32.totalorder %s20, 3
      %p127 = scmp.ne.s32.totalorder %s122, %s124
      %p128 = scmp.eq.s32.totalorder %s20, 0
      %p129 = por %p127, %p128
      %p130 = scmp.ne.s32.totalorder %s122, %s124
      %p131 = scmp.eq.s32.totalorder %s25, 3
      %p132 = por %p130, %p131
      %p133 = scmp.ne.s32.totalorder %s124, %s125
      %p134 = scmp.eq.s32.totalorder %s25, 0
      %p135 = por %p133, %p134
      %p136 = scmp.ne.s32.totalorder %s124, %s125
      %p137 = scmp.eq.s32.totalorder %s26, 3
      %p138 = por %p136, %p137
      %p140 = scmp.ne.s32.totalorder %s125, %s139
      %p141 = scmp.eq.s32.totalorder %s26, 0
      %p142 = por %p140, %p141
      %s144 = sadd.s32 %s143, 1
      %p147 = scmp.eq.s32.totalorder %s20, 3
      %p148 = scmp.ne.s32.totalorder %s143, %s145
      %p149 = scmp.eq.s32.totalorder %s20, 0
      %p150 = por %p148, %p149
      %p151 = scmp.ne.s32.totalorder %s143, %s145
      %p152 = scmp.eq.s32.totalorder %s25, 3
      %p153 = por %p151, %p152
      %p154 = scmp.ne.s32.totalorder %s145, %s146
      %p155 = scmp.eq.s32.totalorder %s25, 0
      %p156 = por %p154, %p155
      %p157 = scmp.ne.s32.totalorder %s145, %s146
      %p158 = scmp.eq.s32.totalorder %s26, 3
      %p159 = por %p157, %p158
      %p161 = scmp.ne.s32.totalorder %s146, %s160
      %p162 = scmp.eq.s32.totalorder %s26, 0
      %p163 = por %p161, %p162
      %s165 = sadd.s32 %s164, 1
      %p168 = scmp.eq.s32.totalorder %s20, 3
      %p169 = scmp.ne.s32.totalorder %s164, %s166
      %p170 = scmp.eq.s32.totalorder %s20, 0
      %p171 = por %p169, %p170
      %p172 = scmp.ne.s32.totalorder %s164, %s166
      %p173 = scmp.eq.s32.totalorder %s25, 3
      %p174 = por %p172, %p173
      %p175 = scmp.ne.s32.totalorder %s166, %s167
      %p176 = scmp.eq.s32.totalorder %s25, 0
      %p177 = por %p175, %p176
      %p178 = scmp.ne.s32.totalorder %s166, %s167
      %p179 = scmp.eq.s32.totalorder %s26, 3
      %p180 = por %p178, %p179
      %p182 = scmp.ne.s32.totalorder %s167, %s181
      %p183 = scmp.eq.s32.totalorder %s26, 0
      %p184 = por %p182, %p183
      %s186 = sadd.s32 %s185, 1
      %p189 = scmp.eq.s32.totalorder %s20, 3
      %p190 = scmp.ne.s32.totalorder %s185, %s187
      %p191 = scmp.eq.s32.totalorder %s20, 0
      %p192 = por %p190, %p191
      %p193 = scmp.ne.s32.totalorder %s185, %s187
      %p194 = scmp.eq.s32.totalorder %s25, 3
      %p195 = por %p193, %p194
      %p196 = scmp.ne.s32.totalorder %s187, %s188
      %p197 = scmp.eq.s32.totalorder %s25, 0
      %p198 = por %p196, %p197
      %p199 = scmp.ne.s32.totalorder %s187, %s188
      %p200 = scmp.eq.s32.totalorder %s26, 3
      %p201 = por %p199, %p200
      %p203 = scmp.ne.s32.totalorder %s188, %s202
      %p204 = scmp.eq.s32.totalorder %s26, 0
      %p205 = por %p203, %p204
      %s207 = sadd.s32 %s206, 1
      %p210 = scmp.eq.s32.totalorder %s20, 3
      %p211 = scmp.ne.s32.totalorder %s206, %s208
      %p212 = scmp.eq.s32.totalorder %s20, 0
      %p213 = por %p211, %p212
      %p214 = scmp.ne.s32.totalorder %s206, %s208
      %p215 = scmp.eq.s32.totalorder %s25, 3
      %p216 = por %p214, %p215
      %p217 = scmp.ne.s32.totalorder %s208, %s209
      %p218 = scmp.eq.s32.totalorder %s25, 0
      %p219 = por %p217, %p218
      %p220 = scmp.ne.s32.totalorder %s208, %s209
      %p221 = scmp.eq.s32.totalorder %s26, 3
      %p222 = por %p220, %p221
      %p224 = scmp.ne.s32.totalorder %s209, %s223
      %p225 = scmp.eq.s32.totalorder %s26, 0
      %p226 = por %p224, %p225
      %s228 = sadd.s32 %s227, 1
      %p231 = scmp.eq.s32.totalorder %s20, 3
      %p232 = scmp.ne.s32.totalorder %s227, %s229
      %p233 = scmp.eq.s32.totalorder %s20, 0
      %p234 = por %p232, %p233
      %p235 = scmp.ne.s32.totalorder %s227, %s229
      %p236 = scmp.eq.s32.totalorder %s25, 3
      %p237 = por %p235, %p236
      %p238 = scmp.ne.s32.totalorder %s229, %s230
      %p239 = scmp.eq.s32.totalorder %s25, 0
      %p240 = por %p238, %p239
      %p241 = scmp.ne.s32.totalorder %s229, %s230
      %p242 = scmp.eq.s32.totalorder %s26, 3
      %p243 = por %p241, %p242
      %p245 = scmp.ne.s32.totalorder %s230, %s244
      %p246 = scmp.eq.s32.totalorder %s26, 0
      %p247 = por %p245, %p246
      %s249 = sadd.s32 %s248, 1
      %p252 = scmp.eq.s32.totalorder %s20, 3
      %p253 = scmp.ne.s32.totalorder %s248, %s250
      %p254 = scmp.eq.s32.totalorder %s20, 0
      %p255 = por %p253, %p254
      %p256 = scmp.ne.s32.totalorder %s248, %s250
      %p257 = scmp.eq.s32.totalorder %s25, 3
      %p258 = por %p256, %p257
      %p259 = scmp.ne.s32.totalorder %s250, %s251
      %p260 = scmp.eq.s32.totalorder %s25, 0
      %p261 = por %p259, %p260
      %p262 = scmp.ne.s32.totalorder %s250, %s251
      %p263 = scmp.eq.s32.totalorder %s26, 3
      %p264 = por %p262, %p263
      %p266 = scmp.ne.s32.totalorder %s251, %s265
      %p267 = scmp.eq.s32.totalorder %s26, 0
      %p268 = por %p266, %p267
      %s269 = ssub.s32 %s20, %s27
      %p270 = scmp.eq.s32.totalorder %s269, 0
      %s272 = sadd.s32 %s271, 1
      %s273 = scalar_select %p270, %s271, %s272
      %p276 = pneg %p270
      %p277 = scmp.eq.s32.totalorder %s20, 3
      %p278 = por %p276, %p277
      %p279 = scmp.ne.s32.totalorder %s271, %s274
      %p280 = scmp.eq.s32.totalorder %s20, 0
      %p281 = por %p279, %p280
      %p282 = scmp.ne.s32.totalorder %s271, %s274
      %p283 = scmp.eq.s32.totalorder %s25, 3
      %p284 = por %p282, %p283
      %p285 = scmp.ne.s32.totalorder %s274, %s275
      %p286 = scmp.eq.s32.totalorder %s25, 0
      %p287 = por %p285, %p286
      %p288 = scmp.ne.s32.totalorder %s274, %s275
      %p289 = scmp.eq.s32.totalorder %s26, 3
      %p290 = por %p288, %p289
      %p292 = scmp.ne.s32.totalorder %s275, %s291
      %p293 = scmp.eq.s32.totalorder %s26, 0
      %p294 = por %p292, %p293
      %p295 = scmp.le.s32.totalorder 1, %s20
      %p296 = scmp.lt.s32.totalorder %s20, 5
      %p297 = pnand %p295, %p296
      %p298 = pneg %p297
      // Predicated region
      $region9: #{tpu_custom_call.1} parent=5 // pred_check
        _
      $region10: #{tpu_custom_call.1} parent=5 // pred_check_branch
        %300 = sbr.rel (%p297) target = $region12
      $region11: #{tpu_custom_call.1} parent=5 // pred_region
        %s301 = ssub.s32 %s20, 1
        // Predicated region
        $region13: #{tpu_custom_call.1} parent=11 // pred_check
          %p302 = pneg %p93
        $region14: #{tpu_custom_call.1} parent=11 // pred_check_branch
          %304 = sbr.rel (%p302) target = $region16
        $region15: #{tpu_custom_call.1} parent=11 // pred_region
          _
        $region16: #{tpu_custom_call.1} parent=11 // pred_fallthru
          _
        // Predicated region
        $region17: #{tpu_custom_call.1} parent=11 // pred_check
          %p305 = pneg %p114
        $region18: #{tpu_custom_call.1} parent=11 // pred_check_branch
          %307 = sbr.rel (%p305) target = $region20
        $region19: #{tpu_custom_call.1} parent=11 // pred_region
          _
        $region20: #{tpu_custom_call.1} parent=11 // pred_fallthru
          _
        // Predicated region
        $region21: #{tpu_custom_call.1} parent=11 // pred_check
          %p308 = pneg %p135
        $region22: #{tpu_custom_call.1} parent=11 // pred_check_branch
          %310 = sbr.rel (%p308) target = $region24
        $region23: #{tpu_custom_call.1} parent=11 // pred_region
          _
        $region24: #{tpu_custom_call.1} parent=11 // pred_fallthru
          _
        // Predicated region
        $region25: #{tpu_custom_call.1} parent=11 // pred_check
          %p311 = pneg %p156
        $region26: #{tpu_custom_call.1} parent=11 // pred_check_branch
          %313 = sbr.rel (%p311) target = $region28
        $region27: #{tpu_custom_call.1} parent=11 // pred_region
          _
        $region28: #{tpu_custom_call.1} parent=11 // pred_fallthru
          _
        // Predicated region
        $region29: #{tpu_custom_call.1} parent=11 // pred_check
          %p314 = pneg %p177
        $region30: #{tpu_custom_call.1} parent=11 // pred_check_branch
          %316 = sbr.rel (%p314) target = $region32
        $region31: #{tpu_custom_call.1} parent=11 // pred_region
          _
        $region32: #{tpu_custom_call.1} parent=11 // pred_fallthru
          _
        // Predicated region
        $region33: #{tpu_custom_call.1} parent=11 // pred_check
          %p317 = pneg %p198
        $region34: #{tpu_custom_call.1} parent=11 // pred_check_branch
          %319 = sbr.rel (%p317) target = $region36
        $region35: #{tpu_custom_call.1} parent=11 // pred_region
          _
        $region36: #{tpu_custom_call.1} parent=11 // pred_fallthru
          _
        // Predicated region
        $region37: #{tpu_custom_call.1} parent=11 // pred_check
          %p320 = pneg %p219
        $region38: #{tpu_custom_call.1} parent=11 // pred_check_branch
          %322 = sbr.rel (%p320) target = $region40
        $region39: #{tpu_custom_call.1} parent=11 // pred_region
          _
        $region40: #{tpu_custom_call.1} parent=11 // pred_fallthru
          _
        // Predicated region
        $region41: #{tpu_custom_call.1} parent=11 // pred_check
          %p323 = pneg %p240
        $region42: #{tpu_custom_call.1} parent=11 // pred_check_branch
          %325 = sbr.rel (%p323) target = $region44
        $region43: #{tpu_custom_call.1} parent=11 // pred_region
          _
        $region44: #{tpu_custom_call.1} parent=11 // pred_fallthru
          _
        // Predicated region
        $region45: #{tpu_custom_call.1} parent=11 // pred_check
          %p326 = pneg %p261
        $region46: #{tpu_custom_call.1} parent=11 // pred_check_branch
          %328 = sbr.rel (%p326) target = $region48
        $region47: #{tpu_custom_call.1} parent=11 // pred_region
          _
        $region48: #{tpu_custom_call.1} parent=11 // pred_fallthru
          _
      $region12: #{tpu_custom_call.1} parent=5 // pred_fallthru
        _
      %p329 = scmp.lt.s32.totalorder %s20, 4
      // Predicated region
      $region49: #{tpu_custom_call.1} parent=5 // pred_check
        %p330 = pneg %p329
      $region50: #{tpu_custom_call.1} parent=5 // pred_check_branch
        %332 = sbr.rel (%p330) target = $region52
      $region51: #{tpu_custom_call.1} parent=5 // pred_region
        // Predicated region
        $region53: #{tpu_custom_call.1} parent=51 // pred_check
          %p333 = pneg %p40
        $region54: #{tpu_custom_call.1} parent=51 // pred_check_branch
          %335 = sbr.rel (%p333) target = $region56
        $region55: #{tpu_custom_call.1} parent=51 // pred_region
          %s336 = smul.u32 10, %s20
          %s337 = ssub.s32 34, %s336
          %p338 = scmp.lt.s32.totalorder %s337, 10
          %s339 = scalar_select %p338, %s337, 10
          %s340 = smul.u32 8, %s339
          %p341 = scmp.lt.s32.totalorder %s336, 33
          %s342 = scalar_select %p341, %s336, 33
          %s343 = smul.addr %s342, 8
          %s344 = scalar_lea.vmem %s0, %s343
          %s345 = smul.u32 10, %s20
          %s346 = ssub.s32 34, %s345
          %p347 = scmp.lt.s32.totalorder %s346, 10
          %s348 = scalar_select %p347, %s346, 10
          %s349 = smul.u32 8, %s348
        $region56: #{tpu_custom_call.1} parent=51 // pred_fallthru
          _
        // Predicated region
        $region57: #{tpu_custom_call.1} parent=51 // pred_check
          %p350 = pneg %p66
        $region58: #{tpu_custom_call.1} parent=51 // pred_check_branch
          %352 = sbr.rel (%p350) target = $region60
        $region59: #{tpu_custom_call.1} parent=51 // pred_region
          %s353 = smul.u32 10, %s20
          %s354 = ssub.s32 34, %s353
          %p355 = scmp.lt.s32.totalorder %s354, 10
          %s356 = scalar_select %p355, %s354, 10
          %s357 = smul.u32 8, %s356
          %p358 = scmp.lt.s32.totalorder %s353, 33
          %s359 = scalar_select %p358, %s353, 33
          %s360 = smul.addr %s359, 8
          %s361 = scalar_lea.vmem %s1, %s360
          %s362 = smul.u32 10, %s20
          %s363 = ssub.s32 34, %s362
          %p364 = scmp.lt.s32.totalorder %s363, 10
          %s365 = scalar_select %p364, %s363, 10
          %s366 = smul.u32 8, %s365
        $region60: #{tpu_custom_call.1} parent=51 // pred_fallthru
          _
      $region52: #{tpu_custom_call.1} parent=5 // pred_fallthru
        _
      %p367 = scmp.le.s32.totalorder 1, %s20
      %p368 = scmp.lt.s32.totalorder %s20, 5
      %p369 = pnand %p367, %p368
      %p370 = pneg %p369
      // Predicated region
      $region61: #{tpu_custom_call.1} parent=5 // pred_check
        _
      $region62: #{tpu_custom_call.1} parent=5 // pred_check_branch
        %372 = sbr.rel (%p369) target = $region64
      $region63: #{tpu_custom_call.1} parent=5 // pred_region
        %s373 = ssub.s32 %s20, 1
        %s374 = smul.u32 10, %s25
        %s375 = ssub.s32 34, %s374
        %p376 = scmp.lt.s32.totalorder %s375, 10
        %s377 = scalar_select %p376, %s375, 10
        %s378 = smul.u32 8, %s377
        %p379 = scmp.lt.s32.totalorder %s374, 33
        %s380 = scalar_select %p379, %s374, 33
        %s381 = smul.addr %s380, 8
        %s382 = scalar_lea.vmem %s0, %s381
        %p383 = pneg %p46
        %p384 = pneg %p43
        %s385 = smul.u32 10, %s25
        %s386 = ssub.s32 34, %s385
        %p387 = scmp.lt.s32.totalorder %s386, 10
        %s388 = scalar_select %p387, %s386, 10
        %s389 = smul.u32 8, %s388
        %p390 = scmp.lt.s32.totalorder %s385, 33
        %s391 = scalar_select %p390, %s385, 33
        %s392 = smul.addr %s391, 8
        %s393 = scalar_lea.vmem %s1, %s392
        %p394 = pneg %p72
        %p395 = pneg %p69
        %p396 = pneg %p93
        %p397 = pneg %p90
        %p398 = pneg %p114
        %p399 = pneg %p111
        %p400 = pneg %p135
        %p401 = pneg %p132
        %p402 = pneg %p156
        %p403 = pneg %p153
        %p404 = pneg %p177
        %p405 = pneg %p174
        %p406 = pneg %p198
        %p407 = pneg %p195
        %p408 = pneg %p219
        %p409 = pneg %p216
        %p410 = pneg %p240
        %p411 = pneg %p237
        %p412 = pneg %p261
        %p413 = pneg %p258
        %p414 = pneg %p287
        %p415 = pneg %p284
        %s416 = sand.u32 %s274, 1
        %s417 = scalar_lea.sflag [#allocation3], %s416
        %s418 = sand.u32 %s274, 1
        %s419 = smul.addr %s418, 80
        %s420 = scalar_lea.vmem [#allocation2], %s419
        %s421 = smul.u32 10, %s25
        %s422 = ssub.s32 34, %s421
        %p423 = scmp.lt.s32.totalorder %s422, 10
        %s424 = scalar_select %p423, %s422, 10
        %s425 = smul.u32 8, %s424
        %p426 = scmp.lt.s32.totalorder %s421, 33
        %s427 = scalar_select %p426, %s421, 33
        %s428 = smul.addr %s427, 8
        %s429 = scalar_lea.vmem %s0, %s428
        %s430 = smul.u32 10, %s25
        %s431 = ssub.s32 34, %s430
        %p432 = scmp.lt.s32.totalorder %s431, 10
        %s433 = scalar_select %p432, %s431, 10
        %s434 = smul.u32 8, %s433
        %s435 = smul.u32 10, %s25
        %s436 = ssub.s32 34, %s435
        %p437 = scmp.lt.s32.totalorder %s436, 10
        %s438 = scalar_select %p437, %s436, 10
        %s439 = smul.u32 8, %s438
        %p440 = scmp.lt.s32.totalorder %s435, 33
        %s441 = scalar_select %p440, %s435, 33
        %s442 = smul.addr %s441, 8
        %s443 = scalar_lea.vmem %s1, %s442
        %s444 = smul.u32 10, %s25
        %s445 = ssub.s32 34, %s444
        %p446 = scmp.lt.s32.totalorder %s445, 10
        %s447 = scalar_select %p446, %s445, 10
        %s448 = smul.u32 8, %s447
        %s449 = smul.u32 10, %s25
        %s450 = ssub.s32 34, %s449
        %p451 = scmp.lt.s32.totalorder %s450, 10
        %s452 = scalar_select %p451, %s450, 10
        %s453 = smul.u32 8, %s452
        %v454 = vld [vmem:[%s429] sm:$0xff]
        %v455 = vld [vmem:[%s429 + $0x8] sm:$0xff]
        %v456 = vld [vmem:[%s429 + $0x10] sm:$0xff]
        %v457 = vld [vmem:[%s429 + $0x18] sm:$0xff]
        %v458 = vld [vmem:[%s429 + $0x20] sm:$0xff]
        %v459 = vld [vmem:[%s429 + $0x28] sm:$0xff]
        %v460 = vld [vmem:[%s429 + $0x30] sm:$0xff]
        %v461 = vld [vmem:[%s429 + $0x38] sm:$0xff]
        %v462 = vld [vmem:[%s429 + $0x40] sm:$0xff]
        %v463 = vld [vmem:[%s429 + $0x48] sm:$0xff]
        %v464 = vld [vmem:[%s443] sm:$0xff]
        %v465 = vld [vmem:[%s443 + $0x8] sm:$0xff]
        %v466 = vld [vmem:[%s443 + $0x10] sm:$0xff]
        %v467 = vld [vmem:[%s443 + $0x18] sm:$0xff]
        %v468 = vld [vmem:[%s443 + $0x20] sm:$0xff]
        %v469 = vld [vmem:[%s443 + $0x28] sm:$0xff]
        %v470 = vld [vmem:[%s443 + $0x30] sm:$0xff]
        %v471 = vld [vmem:[%s443 + $0x38] sm:$0xff]
        %v472 = vld [vmem:[%s443 + $0x40] sm:$0xff]
        %v473 = vld [vmem:[%s443 + $0x48] sm:$0xff]
        %v474 = vld [vmem:[%s2] sm:$0xff]
        %v475 = vld [vmem:[%s2 + $0x8] sm:$0xff]
        %v476 = vld [vmem:[%s2 + $0x10] sm:$0xff]
        %v477 = vld [vmem:[%s2 + $0x18] sm:$0xff]
        %v478 = vld [vmem:[%s10] sm:$0x1]
        %v480 = vperm.slane %v478, 0
        %vm482 = vcmask 261120
        %v484 = vsel %vm482, %v454, 0
        %v487 = vsel %vm482, %v455, 0
        %v490 = vsel %vm482, %v456, 0
        %v493 = vsel %vm482, %v457, 0
        %v496 = vsel %vm482, %v458, 0
        %v499 = vsel %vm482, %v459, 0
        %v502 = vsel %vm482, %v460, 0
        %v505 = vsel %vm482, %v461, 0
        %v508 = vsel %vm482, %v462, 0
        %v511 = vsel %vm482, %v463, 0
        %513 = vmatpush.msra.mxu0 0.0
        %514 = vmatpush.msra.mxu0 0.0
        %515 = vmatpush.msra.mxu0 0.0
        %516 = vmatpush.msra.mxu0 0.0
        %517 = vmatpush.msra.mxu0 0.0
        %518 = vmatpush.msra.mxu0 0.0
        %519 = vmatpush.msra.mxu0 0.0
        %520 = vmatpush.msra.mxu0 0.0
        %521 = vmatpush.msra.mxu0 0.0
        %522 = vmatpush.msra.mxu0 0.0
        %523 = vmatpush.msra.mxu0 0.0
        %524 = vmatpush.msra.mxu0 0.0
        %525 = vmatpush.msra.mxu0 %v477
        %526 = vmatpush.msra.mxu0 %v476
        %527 = vmatpush.msra.mxu0 %v475
        %528 = vmatpush.msra.mxu0 %v474
        %529 = vmatmul.f32.gmra.mxu0 %v484
        %v530 = vpop.f32.mrf.mxu0
        %v531 = vadd.f32 %v480, %v530
        %532 = vmatmul.f32.gmra.mxu0 %v487
        %v533 = vpop.f32.mrf.mxu0
        %v534 = vadd.f32 %v480, %v533
        %535 = vmatmul.f32.gmra.mxu0 %v490
        %v536 = vpop.f32.mrf.mxu0
        %v537 = vadd.f32 %v480, %v536
        %538 = vmatmul.f32.gmra.mxu0 %v493
        %v539 = vpop.f32.mrf.mxu0
        %v540 = vadd.f32 %v480, %v539
        %541 = vmatmul.f32.gmra.mxu0 %v496
        %v542 = vpop.f32.mrf.mxu0
        %v543 = vadd.f32 %v480, %v542
        %544 = vmatmul.f32.gmra.mxu0 %v499
        %v545 = vpop.f32.mrf.mxu0
        %v546 = vadd.f32 %v480, %v545
        %547 = vmatmul.f32.gmra.mxu0 %v502
        %v548 = vpop.f32.mrf.mxu0
        %v549 = vadd.f32 %v480, %v548
        %550 = vmatmul.f32.gmra.mxu0 %v505
        %v551 = vpop.f32.mrf.mxu0
        %v552 = vadd.f32 %v480, %v551
        %553 = vmatmul.f32.gmra.mxu0 %v508
        %v554 = vpop.f32.mrf.mxu0
        %v555 = vadd.f32 %v480, %v554
        %556 = vmatmul.f32.gmra.mxu0 %v511
        %v557 = vpop.f32.mrf.mxu0
        %v558 = vadd.f32 %v480, %v557
        %559 = vdwg.mxu0
        %v560 = vmax.f32 %v531, 0.0
        %v561 = vmax.f32 %v534, 0.0
        %v562 = vmax.f32 %v537, 0.0
        %v563 = vmax.f32 %v540, 0.0
        %v564 = vmax.f32 %v543, 0.0
        %v565 = vmax.f32 %v546, 0.0
        %v566 = vmax.f32 %v549, 0.0
        %v567 = vmax.f32 %v552, 0.0
        %v568 = vmax.f32 %v555, 0.0
        %v569 = vmax.f32 %v558, 0.0
        %v570 = vld [vmem:[%s3] sm:$0xff]
        %v571 = vld [vmem:[%s3 + $0x8] sm:$0xff]
        %v572 = vld [vmem:[%s3 + $0x10] sm:$0xff]
        %v573 = vld [vmem:[%s3 + $0x18] sm:$0xff]
        %v574 = vld [vmem:[%s3 + $0x20] sm:$0xff]
        %v575 = vld [vmem:[%s3 + $0x28] sm:$0xff]
        %v576 = vld [vmem:[%s3 + $0x30] sm:$0xff]
        %v577 = vld [vmem:[%s3 + $0x38] sm:$0xff]
        %v578 = vld [vmem:[%s3 + $0x40] sm:$0xff]
        %v579 = vld [vmem:[%s3 + $0x48] sm:$0xff]
        %v580 = vld [vmem:[%s3 + $0x50] sm:$0xff]
        %v581 = vld [vmem:[%s3 + $0x58] sm:$0xff]
        %v582 = vld [vmem:[%s3 + $0x60] sm:$0xff]
        %v583 = vld [vmem:[%s3 + $0x68] sm:$0xff]
        %v584 = vld [vmem:[%s3 + $0x70] sm:$0xff]
        %v585 = vld [vmem:[%s3 + $0x78] sm:$0xff]
        %v586 = vld [vmem:[%s10 + $0x1] sm:$0x1]
        %v588 = vperm.slane %v586, 0
        %590 = vmatpush.msra.mxu0 %v585
        %591 = vmatpush.msra.mxu0 %v584
        %592 = vmatpush.msra.mxu0 %v583
        %593 = vmatpush.msra.mxu0 %v582
        %594 = vmatpush.msra.mxu0 %v581
        %595 = vmatpush.msra.mxu0 %v580
        %596 = vmatpush.msra.mxu0 %v579
        %597 = vmatpush.msra.mxu0 %v578
        %598 = vmatpush.msra.mxu0 %v577
        %599 = vmatpush.msra.mxu0 %v576
        %600 = vmatpush.msra.mxu0 %v575
        %601 = vmatpush.msra.mxu0 %v574
        %602 = vmatpush.msra.mxu0 %v573
        %603 = vmatpush.msra.mxu0 %v572
        %604 = vmatpush.msra.mxu0 %v571
        %605 = vmatpush.msra.mxu0 %v570
        %606 = vmatmul.f32.gmra.mxu0 %v560
        %v607 = vpop.f32.mrf.mxu0
        %v608 = vadd.f32 %v588, %v607
        %609 = vmatmul.f32.gmra.mxu0 %v561
        %v610 = vpop.f32.mrf.mxu0
        %v611 = vadd.f32 %v588, %v610
        %612 = vmatmul.f32.gmra.mxu0 %v562
        %v613 = vpop.f32.mrf.mxu0
        %v614 = vadd.f32 %v588, %v613
        %615 = vmatmul.f32.gmra.mxu0 %v563
        %v616 = vpop.f32.mrf.mxu0
        %v617 = vadd.f32 %v588, %v616
        %618 = vmatmul.f32.gmra.mxu0 %v564
        %v619 = vpop.f32.mrf.mxu0
        %v620 = vadd.f32 %v588, %v619
        %621 = vmatmul.f32.gmra.mxu0 %v565
        %v622 = vpop.f32.mrf.mxu0
        %v623 = vadd.f32 %v588, %v622
        %624 = vmatmul.f32.gmra.mxu0 %v566
        %v625 = vpop.f32.mrf.mxu0
        %v626 = vadd.f32 %v588, %v625
        %627 = vmatmul.f32.gmra.mxu0 %v567
        %v628 = vpop.f32.mrf.mxu0
        %v629 = vadd.f32 %v588, %v628
        %630 = vmatmul.f32.gmra.mxu0 %v568
        %v631 = vpop.f32.mrf.mxu0
        %v632 = vadd.f32 %v588, %v631
        %633 = vmatmul.f32.gmra.mxu0 %v569
        %v634 = vpop.f32.mrf.mxu0
        %v635 = vadd.f32 %v588, %v634
        %636 = vdwg.mxu0
        %v637 = vmax.f32 %v608, 0.0
        %v638 = vmax.f32 %v611, 0.0
        %v639 = vmax.f32 %v614, 0.0
        %v640 = vmax.f32 %v617, 0.0
        %v641 = vmax.f32 %v620, 0.0
        %v642 = vmax.f32 %v623, 0.0
        %v643 = vmax.f32 %v626, 0.0
        %v644 = vmax.f32 %v629, 0.0
        %v645 = vmax.f32 %v632, 0.0
        %v646 = vmax.f32 %v635, 0.0
        %v647 = vld [vmem:[%s4] sm:$0xff]
        %v648 = vld [vmem:[%s4 + $0x8] sm:$0xff]
        %v649 = vld [vmem:[%s4 + $0x10] sm:$0xff]
        %v650 = vld [vmem:[%s4 + $0x18] sm:$0xff]
        %v651 = vld [vmem:[%s4 + $0x20] sm:$0xff]
        %v652 = vld [vmem:[%s4 + $0x28] sm:$0xff]
        %v653 = vld [vmem:[%s4 + $0x30] sm:$0xff]
        %v654 = vld [vmem:[%s4 + $0x38] sm:$0xff]
        %v655 = vld [vmem:[%s10 + $0x2] sm:$0x1]
        %v657 = vperm.slane %v655, 0
        %vm659 = vcmask 523264
        %v661 = vsel %vm659, %v637, 0
        %v664 = vsel %vm659, %v638, 0
        %v667 = vsel %vm659, %v639, 0
        %v670 = vsel %vm659, %v640, 0
        %v673 = vsel %vm659, %v641, 0
        %v676 = vsel %vm659, %v642, 0
        %v679 = vsel %vm659, %v643, 0
        %v682 = vsel %vm659, %v644, 0
        %v685 = vsel %vm659, %v645, 0
        %v688 = vsel %vm659, %v646, 0
        %690 = vmatpush.msra.mxu0 0.0
        %691 = vmatpush.msra.mxu0 0.0
        %692 = vmatpush.msra.mxu0 0.0
        %693 = vmatpush.msra.mxu0 0.0
        %694 = vmatpush.msra.mxu0 0.0
        %695 = vmatpush.msra.mxu0 0.0
        %696 = vmatpush.msra.mxu0 0.0
        %697 = vmatpush.msra.mxu0 0.0
        %698 = vmatpush.msra.mxu0 %v654
        %699 = vmatpush.msra.mxu0 %v653
        %700 = vmatpush.msra.mxu0 %v652
        %701 = vmatpush.msra.mxu0 %v651
        %702 = vmatpush.msra.mxu0 %v650
        %703 = vmatpush.msra.mxu0 %v649
        %704 = vmatpush.msra.mxu0 %v648
        %705 = vmatpush.msra.mxu0 %v647
        %706 = vmatmul.f32.gmra.mxu0 %v661
        %v707 = vpop.f32.mrf.mxu0
        %v708 = vadd.f32 %v657, %v707
        %709 = vmatmul.f32.gmra.mxu0 %v664
        %v710 = vpop.f32.mrf.mxu0
        %v711 = vadd.f32 %v657, %v710
        %712 = vmatmul.f32.gmra.mxu0 %v667
        %v713 = vpop.f32.mrf.mxu0
        %v714 = vadd.f32 %v657, %v713
        %715 = vmatmul.f32.gmra.mxu0 %v670
        %v716 = vpop.f32.mrf.mxu0
        %v717 = vadd.f32 %v657, %v716
        %718 = vmatmul.f32.gmra.mxu0 %v673
        %v719 = vpop.f32.mrf.mxu0
        %v720 = vadd.f32 %v657, %v719
        %721 = vmatmul.f32.gmra.mxu0 %v676
        %v722 = vpop.f32.mrf.mxu0
        %v723 = vadd.f32 %v657, %v722
        %724 = vmatmul.f32.gmra.mxu0 %v679
        %v725 = vpop.f32.mrf.mxu0
        %v726 = vadd.f32 %v657, %v725
        %727 = vmatmul.f32.gmra.mxu0 %v682
        %v728 = vpop.f32.mrf.mxu0
        %v729 = vadd.f32 %v657, %v728
        %730 = vmatmul.f32.gmra.mxu0 %v685
        %v731 = vpop.f32.mrf.mxu0
        %v732 = vadd.f32 %v657, %v731
        %733 = vmatmul.f32.gmra.mxu0 %v688
        %v734 = vpop.f32.mrf.mxu0
        %v735 = vadd.f32 %v657, %v734
        %736 = vdwg.mxu0
        %v737 = vld [vmem:[%s5] sm:$0xff]
        %v738 = vld [vmem:[%s5 + $0x8] sm:$0xff]
        %v739 = vld [vmem:[%s5 + $0x10] sm:$0xff]
        %v740 = vld [vmem:[%s5 + $0x18] sm:$0xff]
        %v741 = vld [vmem:[%s5 + $0x20] sm:$0xff]
        %v742 = vld [vmem:[%s5 + $0x28] sm:$0xff]
        %v743 = vld [vmem:[%s5 + $0x30] sm:$0xff]
        %v744 = vld [vmem:[%s5 + $0x38] sm:$0xff]
        %v745 = vld [vmem:[%s10 + $0x3] sm:$0x1]
        %v747 = vperm.slane %v745, 0
        %749 = vmatpush.msra.mxu0 0.0
        %750 = vmatpush.msra.mxu0 0.0
        %751 = vmatpush.msra.mxu0 0.0
        %752 = vmatpush.msra.mxu0 0.0
        %753 = vmatpush.msra.mxu0 0.0
        %754 = vmatpush.msra.mxu0 0.0
        %755 = vmatpush.msra.mxu0 0.0
        %756 = vmatpush.msra.mxu0 0.0
        %757 = vmatpush.msra.mxu0 %v744
        %758 = vmatpush.msra.mxu0 %v743
        %759 = vmatpush.msra.mxu0 %v742
        %760 = vmatpush.msra.mxu0 %v741
        %761 = vmatpush.msra.mxu0 %v740
        %762 = vmatpush.msra.mxu0 %v739
        %763 = vmatpush.msra.mxu0 %v738
        %764 = vmatpush.msra.mxu0 %v737
        %765 = vmatmul.f32.gmra.mxu0 %v661
        %v766 = vpop.f32.mrf.mxu0
        %v767 = vadd.f32 %v747, %v766
        %768 = vmatmul.f32.gmra.mxu0 %v664
        %v769 = vpop.f32.mrf.mxu0
        %v770 = vadd.f32 %v747, %v769
        %771 = vmatmul.f32.gmra.mxu0 %v667
        %v772 = vpop.f32.mrf.mxu0
        %v773 = vadd.f32 %v747, %v772
        %774 = vmatmul.f32.gmra.mxu0 %v670
        %v775 = vpop.f32.mrf.mxu0
        %v776 = vadd.f32 %v747, %v775
        %777 = vmatmul.f32.gmra.mxu0 %v673
        %v778 = vpop.f32.mrf.mxu0
        %v779 = vadd.f32 %v747, %v778
        %780 = vmatmul.f32.gmra.mxu0 %v676
        %v781 = vpop.f32.mrf.mxu0
        %v782 = vadd.f32 %v747, %v781
        %783 = vmatmul.f32.gmra.mxu0 %v679
        %v784 = vpop.f32.mrf.mxu0
        %v785 = vadd.f32 %v747, %v784
        %786 = vmatmul.f32.gmra.mxu0 %v682
        %v787 = vpop.f32.mrf.mxu0
        %v788 = vadd.f32 %v747, %v787
        %789 = vmatmul.f32.gmra.mxu0 %v685
        %v790 = vpop.f32.mrf.mxu0
        %v791 = vadd.f32 %v747, %v790
        %792 = vmatmul.f32.gmra.mxu0 %v688
        %v793 = vpop.f32.mrf.mxu0
        %v794 = vadd.f32 %v747, %v793
        %795 = vdwg.mxu0
        %v796 = vmul.f32 %v767, 0.5
        %v797 = vmul.f32 %v770, 0.5
        %v798 = vmul.f32 %v773, 0.5
        %v799 = vmul.f32 %v776, 0.5
        %v800 = vmul.f32 %v779, 0.5
        %v801 = vmul.f32 %v782, 0.5
        %v802 = vmul.f32 %v785, 0.5
        %v803 = vmul.f32 %v788, 0.5
        %v804 = vmul.f32 %v791, 0.5
        %v805 = vmul.f32 %v794, 0.5
        %v806 = vmul.f32 %v796, 1.442695
        %v807 = vpow.pop %v806
        %v808 = vmul.f32 %v797, 1.442695
        %v809 = vpow.pop %v808
        %v810 = vmul.f32 %v798, 1.442695
        %v811 = vpow.pop %v810
        %v812 = vmul.f32 %v799, 1.442695
        %v813 = vpow.pop %v812
        %v814 = vmul.f32 %v800, 1.442695
        %v815 = vpow.pop %v814
        %v816 = vmul.f32 %v801, 1.442695
        %v817 = vpow.pop %v816
        %v818 = vmul.f32 %v802, 1.442695
        %v819 = vpow.pop %v818
        %v820 = vmul.f32 %v803, 1.442695
        %v821 = vpow.pop %v820
        %v822 = vmul.f32 %v804, 1.442695
        %v823 = vpow.pop %v822
        %v824 = vmul.f32 %v805, 1.442695
        %v825 = vpow.pop %v824
        %v826 = vmul.f32 %v464, %v807
        %v827 = vmul.f32 %v465, %v809
        %v828 = vmul.f32 %v466, %v811
        %v829 = vmul.f32 %v467, %v813
        %v830 = vmul.f32 %v468, %v815
        %v831 = vmul.f32 %v469, %v817
        %v832 = vmul.f32 %v470, %v819
        %v833 = vmul.f32 %v471, %v821
        %v834 = vmul.f32 %v472, %v823
        %v835 = vmul.f32 %v473, %v825
        %v836 = vadd.f32 %v708, %v826
        %v837 = vadd.f32 %v711, %v827
        %v838 = vadd.f32 %v714, %v828
        %v839 = vadd.f32 %v717, %v829
        %v840 = vadd.f32 %v720, %v830
        %v841 = vadd.f32 %v723, %v831
        %v842 = vadd.f32 %v726, %v832
        %v843 = vadd.f32 %v729, %v833
        %v844 = vadd.f32 %v732, %v834
        %v845 = vadd.f32 %v735, %v835
        %v846 = vld [vmem:[%s6] sm:$0xff]
        %v847 = vld [vmem:[%s10 + $0x4] sm:$0x1]
        %v849 = vperm.slane %v847, 0
        %vm851 = vcmask 64512
        %v853 = vsel %vm851, %v836, 0
        %v856 = vsel %vm851, %v837, 0
        %v859 = vsel %vm851, %v838, 0
        %v862 = vsel %vm851, %v839, 0
        %v865 = vsel %vm851, %v840, 0
        %v868 = vsel %vm851, %v841, 0
        %v871 = vsel %vm851, %v842, 0
        %v874 = vsel %vm851, %v843, 0
        %v877 = vsel %vm851, %v844, 0
        %v880 = vsel %vm851, %v845, 0
        %882 = vmatpush.msra.mxu0 0.0
        %883 = vmatpush.msra.mxu0 0.0
        %884 = vmatpush.msra.mxu0 0.0
        %885 = vmatpush.msra.mxu0 0.0
        %886 = vmatpush.msra.mxu0 0.0
        %887 = vmatpush.msra.mxu0 0.0
        %888 = vmatpush.msra.mxu0 0.0
        %889 = vmatpush.msra.mxu0 0.0
        %890 = vmatpush.msra.mxu0 0.0
        %891 = vmatpush.msra.mxu0 0.0
        %892 = vmatpush.msra.mxu0 0.0
        %893 = vmatpush.msra.mxu0 0.0
        %894 = vmatpush.msra.mxu0 0.0
        %895 = vmatpush.msra.mxu0 0.0
        %896 = vmatpush.msra.mxu0 0.0
        %897 = vmatpush.msra.mxu0 %v846
        %898 = vmatmul.f32.gmra.mxu0 %v853
        %v899 = vpop.f32.mrf.mxu0
        %v900 = vadd.f32 %v849, %v899
        %901 = vmatmul.f32.gmra.mxu0 %v856
        %v902 = vpop.f32.mrf.mxu0
        %v903 = vadd.f32 %v849, %v902
        %904 = vmatmul.f32.gmra.mxu0 %v859
        %v905 = vpop.f32.mrf.mxu0
        %v906 = vadd.f32 %v849, %v905
        %907 = vmatmul.f32.gmra.mxu0 %v862
        %v908 = vpop.f32.mrf.mxu0
        %v909 = vadd.f32 %v849, %v908
        %910 = vmatmul.f32.gmra.mxu0 %v865
        %v911 = vpop.f32.mrf.mxu0
        %v912 = vadd.f32 %v849, %v911
        %913 = vmatmul.f32.gmra.mxu0 %v868
        %v914 = vpop.f32.mrf.mxu0
        %v915 = vadd.f32 %v849, %v914
        %916 = vmatmul.f32.gmra.mxu0 %v871
        %v917 = vpop.f32.mrf.mxu0
        %v918 = vadd.f32 %v849, %v917
        %919 = vmatmul.f32.gmra.mxu0 %v874
        %v920 = vpop.f32.mrf.mxu0
        %v921 = vadd.f32 %v849, %v920
        %922 = vmatmul.f32.gmra.mxu0 %v877
        %v923 = vpop.f32.mrf.mxu0
        %v924 = vadd.f32 %v849, %v923
        %925 = vmatmul.f32.gmra.mxu0 %v880
        %v926 = vpop.f32.mrf.mxu0
        %v927 = vadd.f32 %v849, %v926
        %928 = vdwg.mxu0
        %v929 = vmax.f32 %v900, 0.0
        %v930 = vmax.f32 %v903, 0.0
        %v931 = vmax.f32 %v906, 0.0
        %v932 = vmax.f32 %v909, 0.0
        %v933 = vmax.f32 %v912, 0.0
        %v934 = vmax.f32 %v915, 0.0
        %v935 = vmax.f32 %v918, 0.0
        %v936 = vmax.f32 %v921, 0.0
        %v937 = vmax.f32 %v924, 0.0
        %v938 = vmax.f32 %v927, 0.0
        %v939 = vld [vmem:[%s7] sm:$0xff]
        %v940 = vld [vmem:[%s7 + $0x8] sm:$0xff]
        %v941 = vld [vmem:[%s7 + $0x10] sm:$0xff]
        %v942 = vld [vmem:[%s7 + $0x18] sm:$0xff]
        %v943 = vld [vmem:[%s7 + $0x20] sm:$0xff]
        %v944 = vld [vmem:[%s7 + $0x28] sm:$0xff]
        %v945 = vld [vmem:[%s7 + $0x30] sm:$0xff]
        %v946 = vld [vmem:[%s7 + $0x38] sm:$0xff]
        %v947 = vld [vmem:[%s10 + $0x5] sm:$0x1]
        %v949 = vperm.slane %v947, 0
        %v952 = vsel %vm659, %v929, 0
        %v955 = vsel %vm659, %v930, 0
        %v958 = vsel %vm659, %v931, 0
        %v961 = vsel %vm659, %v932, 0
        %v964 = vsel %vm659, %v933, 0
        %v967 = vsel %vm659, %v934, 0
        %v970 = vsel %vm659, %v935, 0
        %v973 = vsel %vm659, %v936, 0
        %v976 = vsel %vm659, %v937, 0
        %v979 = vsel %vm659, %v938, 0
        %981 = vmatpush.msra.mxu0 0.0
        %982 = vmatpush.msra.mxu0 0.0
        %983 = vmatpush.msra.mxu0 0.0
        %984 = vmatpush.msra.mxu0 0.0
        %985 = vmatpush.msra.mxu0 0.0
        %986 = vmatpush.msra.mxu0 0.0
        %987 = vmatpush.msra.mxu0 0.0
        %988 = vmatpush.msra.mxu0 0.0
        %989 = vmatpush.msra.mxu0 %v946
        %990 = vmatpush.msra.mxu0 %v945
        %991 = vmatpush.msra.mxu0 %v944
        %992 = vmatpush.msra.mxu0 %v943
        %993 = vmatpush.msra.mxu0 %v942
        %994 = vmatpush.msra.mxu0 %v941
        %995 = vmatpush.msra.mxu0 %v940
        %996 = vmatpush.msra.mxu0 %v939
        %997 = vmatmul.f32.gmra.mxu0 %v952
        %v998 = vpop.f32.mrf.mxu0
        %v999 = vadd.f32 %v949, %v998
        %1000 = vmatmul.f32.gmra.mxu0 %v955
        %v1001 = vpop.f32.mrf.mxu0
        %v1002 = vadd.f32 %v949, %v1001
        %1003 = vmatmul.f32.gmra.mxu0 %v958
        %v1004 = vpop.f32.mrf.mxu0
        %v1005 = vadd.f32 %v949, %v1004
        %1006 = vmatmul.f32.gmra.mxu0 %v961
        %v1007 = vpop.f32.mrf.mxu0
        %v1008 = vadd.f32 %v949, %v1007
        %1009 = vmatmul.f32.gmra.mxu0 %v964
        %v1010 = vpop.f32.mrf.mxu0
        %v1011 = vadd.f32 %v949, %v1010
        %1012 = vmatmul.f32.gmra.mxu0 %v967
        %v1013 = vpop.f32.mrf.mxu0
        %v1014 = vadd.f32 %v949, %v1013
        %1015 = vmatmul.f32.gmra.mxu0 %v970
        %v1016 = vpop.f32.mrf.mxu0
        %v1017 = vadd.f32 %v949, %v1016
        %1018 = vmatmul.f32.gmra.mxu0 %v973
        %v1019 = vpop.f32.mrf.mxu0
        %v1020 = vadd.f32 %v949, %v1019
        %1021 = vmatmul.f32.gmra.mxu0 %v976
        %v1022 = vpop.f32.mrf.mxu0
        %v1023 = vadd.f32 %v949, %v1022
        %1024 = vmatmul.f32.gmra.mxu0 %v979
        %v1025 = vpop.f32.mrf.mxu0
        %v1026 = vadd.f32 %v949, %v1025
        %1027 = vdwg.mxu0
        %v1028 = vmax.f32 %v999, 0.0
        %v1029 = vmax.f32 %v1002, 0.0
        %v1030 = vmax.f32 %v1005, 0.0
        %v1031 = vmax.f32 %v1008, 0.0
        %v1032 = vmax.f32 %v1011, 0.0
        %v1033 = vmax.f32 %v1014, 0.0
        %v1034 = vmax.f32 %v1017, 0.0
        %v1035 = vmax.f32 %v1020, 0.0
        %v1036 = vmax.f32 %v1023, 0.0
        %v1037 = vmax.f32 %v1026, 0.0
        %v1038 = vld [vmem:[%s8] sm:$0xff]
        %v1039 = vld [vmem:[%s8 + $0x8] sm:$0xff]
        %v1040 = vld [vmem:[%s8 + $0x10] sm:$0xff]
        %v1041 = vld [vmem:[%s8 + $0x18] sm:$0xff]
        %v1042 = vld [vmem:[%s8 + $0x20] sm:$0xff]
        %v1043 = vld [vmem:[%s8 + $0x28] sm:$0xff]
        %v1044 = vld [vmem:[%s8 + $0x30] sm:$0xff]
        %v1045 = vld [vmem:[%s8 + $0x38] sm:$0xff]
        %v1046 = vld [vmem:[%s8 + $0x40] sm:$0xff]
        %v1047 = vld [vmem:[%s8 + $0x48] sm:$0xff]
        %v1048 = vld [vmem:[%s8 + $0x50] sm:$0xff]
        %v1049 = vld [vmem:[%s8 + $0x58] sm:$0xff]
        %v1050 = vld [vmem:[%s8 + $0x60] sm:$0xff]
        %v1051 = vld [vmem:[%s8 + $0x68] sm:$0xff]
        %v1052 = vld [vmem:[%s8 + $0x70] sm:$0xff]
        %v1053 = vld [vmem:[%s8 + $0x78] sm:$0xff]
        %v1054 = vld [vmem:[%s10 + $0x6] sm:$0x1]
        %v1056 = vperm.slane %v1054, 0
        %1058 = vmatpush.msra.mxu0 %v1053
        %1059 = vmatpush.msra.mxu0 %v1052
        %1060 = vmatpush.msra.mxu0 %v1051
        %1061 = vmatpush.msra.mxu0 %v1050
        %1062 = vmatpush.msra.mxu0 %v1049
        %1063 = vmatpush.msra.mxu0 %v1048
        %1064 = vmatpush.msra.mxu0 %v1047
        %1065 = vmatpush.msra.mxu0 %v1046
        %1066 = vmatpush.msra.mxu0 %v1045
        %1067 = vmatpush.msra.mxu0 %v1044
        %1068 = vmatpush.msra.mxu0 %v1043
        %1069 = vmatpush.msra.mxu0 %v1042
        %1070 = vmatpush.msra.mxu0 %v1041
        %1071 = vmatpush.msra.mxu0 %v1040
        %1072 = vmatpush.msra.mxu0 %v1039
        %1073 = vmatpush.msra.mxu0 %v1038
        %1074 = vmatmul.f32.gmra.mxu0 %v1028
        %v1075 = vpop.f32.mrf.mxu0
        %v1076 = vadd.f32 %v1056, %v1075
        %1077 = vmatmul.f32.gmra.mxu0 %v1029
        %v1078 = vpop.f32.mrf.mxu0
        %v1079 = vadd.f32 %v1056, %v1078
        %1080 = vmatmul.f32.gmra.mxu0 %v1030
        %v1081 = vpop.f32.mrf.mxu0
        %v1082 = vadd.f32 %v1056, %v1081
        %1083 = vmatmul.f32.gmra.mxu0 %v1031
        %v1084 = vpop.f32.mrf.mxu0
        %v1085 = vadd.f32 %v1056, %v1084
        %1086 = vmatmul.f32.gmra.mxu0 %v1032
        %v1087 = vpop.f32.mrf.mxu0
        %v1088 = vadd.f32 %v1056, %v1087
        %1089 = vmatmul.f32.gmra.mxu0 %v1033
        %v1090 = vpop.f32.mrf.mxu0
        %v1091 = vadd.f32 %v1056, %v1090
        %1092 = vmatmul.f32.gmra.mxu0 %v1034
        %v1093 = vpop.f32.mrf.mxu0
        %v1094 = vadd.f32 %v1056, %v1093
        %1095 = vmatmul.f32.gmra.mxu0 %v1035
        %v1096 = vpop.f32.mrf.mxu0
        %v1097 = vadd.f32 %v1056, %v1096
        %1098 = vmatmul.f32.gmra.mxu0 %v1036
        %v1099 = vpop.f32.mrf.mxu0
        %v1100 = vadd.f32 %v1056, %v1099
        %1101 = vmatmul.f32.gmra.mxu0 %v1037
        %v1102 = vpop.f32.mrf.mxu0
        %v1103 = vadd.f32 %v1056, %v1102
        %1104 = vdwg.mxu0
        %v1105 = vxor.u32 %v1076, 2147483648
        %v1106 = vxor.u32 %v1079, 2147483648
        %v1107 = vxor.u32 %v1082, 2147483648
        %v1108 = vxor.u32 %v1085, 2147483648
        %v1109 = vxor.u32 %v1088, 2147483648
        %v1110 = vxor.u32 %v1091, 2147483648
        %v1111 = vxor.u32 %v1094, 2147483648
        %v1112 = vxor.u32 %v1097, 2147483648
        %v1113 = vxor.u32 %v1100, 2147483648
        %v1114 = vxor.u32 %v1103, 2147483648
        %v1115 = vmul.f32 %v1105, 1.442695
        %v1116 = vpow.pop %v1115
        %v1117 = vmul.f32 %v1106, 1.442695
        %v1118 = vpow.pop %v1117
        %v1119 = vmul.f32 %v1107, 1.442695
        %v1120 = vpow.pop %v1119
        %v1121 = vmul.f32 %v1108, 1.442695
        %v1122 = vpow.pop %v1121
        %v1123 = vmul.f32 %v1109, 1.442695
        %v1124 = vpow.pop %v1123
        %v1125 = vmul.f32 %v1110, 1.442695
        %v1126 = vpow.pop %v1125
        %v1127 = vmul.f32 %v1111, 1.442695
        %v1128 = vpow.pop %v1127
        %v1129 = vmul.f32 %v1112, 1.442695
        %v1130 = vpow.pop %v1129
        %v1131 = vmul.f32 %v1113, 1.442695
        %v1132 = vpow.pop %v1131
        %v1133 = vmul.f32 %v1114, 1.442695
        %v1134 = vpow.pop %v1133
        %v1135 = vadd.f32 %v1116, 1.0
        %v1136 = vadd.f32 %v1118, 1.0
        %v1137 = vadd.f32 %v1120, 1.0
        %v1138 = vadd.f32 %v1122, 1.0
        %v1139 = vadd.f32 %v1124, 1.0
        %v1140 = vadd.f32 %v1126, 1.0
        %v1141 = vadd.f32 %v1128, 1.0
        %v1142 = vadd.f32 %v1130, 1.0
        %v1143 = vadd.f32 %v1132, 1.0
        %v1144 = vadd.f32 %v1134, 1.0
        %v1145 = vrcp.pop %v1135
        %v1146 = vmul.f32 %v1135, %v1145
        %v1147 = vsub.f32 1.0, %v1146
        %v1148 = vmul.f32 %v1145, %v1147
        %v1149 = vadd.f32 %v1145, %v1148
        %vm1150 = vweird.f32 %v1135
        %vm1151 = vweird.f32 %v1145
        %vm1152 = vmor %vm1150, %vm1151
        %v1153 = vsel %vm1152, %v1145, %v1149
        %v1154 = vand.u32 2147483647, %v1135
        %vm1155 = vcmp.eq.f32.partialorder %v1154, 8.507059e+37
        %v1156 = vand.u32 %v1135, 2147483648
        %v1157 = vor.u32 1.1754944e-38, %v1156
        %v1158 = vsel %vm1155, %v1157, %v1153
        %v1159 = vmul.f32 1.0, %v1158
        %v1160 = vrcp.pop %v1136
        %v1161 = vmul.f32 %v1136, %v1160
        %v1162 = vsub.f32 1.0, %v1161
        %v1163 = vmul.f32 %v1160, %v1162
        %v1164 = vadd.f32 %v1160, %v1163
        %vm1165 = vweird.f32 %v1136
        %vm1166 = vweird.f32 %v1160
        %vm1167 = vmor %vm1165, %vm1166
        %v1168 = vsel %vm1167, %v1160, %v1164
        %v1169 = vand.u32 2147483647, %v1136
        %vm1170 = vcmp.eq.f32.partialorder %v1169, 8.507059e+37
        %v1171 = vand.u32 %v1136, 2147483648
        %v1172 = vor.u32 1.1754944e-38, %v1171
        %v1173 = vsel %vm1170, %v1172, %v1168
        %v1174 = vmul.f32 1.0, %v1173
        %v1175 = vrcp.pop %v1137
        %v1176 = vmul.f32 %v1137, %v1175
        %v1177 = vsub.f32 1.0, %v1176
        %v1178 = vmul.f32 %v1175, %v1177
        %v1179 = vadd.f32 %v1175, %v1178
        %vm1180 = vweird.f32 %v1137
        %vm1181 = vweird.f32 %v1175
        %vm1182 = vmor %vm1180, %vm1181
        %v1183 = vsel %vm1182, %v1175, %v1179
        %v1184 = vand.u32 2147483647, %v1137
        %vm1185 = vcmp.eq.f32.partialorder %v1184, 8.507059e+37
        %v1186 = vand.u32 %v1137, 2147483648
        %v1187 = vor.u32 1.1754944e-38, %v1186
        %v1188 = vsel %vm1185, %v1187, %v1183
        %v1189 = vmul.f32 1.0, %v1188
        %v1190 = vrcp.pop %v1138
        %v1191 = vmul.f32 %v1138, %v1190
        %v1192 = vsub.f32 1.0, %v1191
        %v1193 = vmul.f32 %v1190, %v1192
        %v1194 = vadd.f32 %v1190, %v1193
        %vm1195 = vweird.f32 %v1138
        %vm1196 = vweird.f32 %v1190
        %vm1197 = vmor %vm1195, %vm1196
        %v1198 = vsel %vm1197, %v1190, %v1194
        %v1199 = vand.u32 2147483647, %v1138
        %vm1200 = vcmp.eq.f32.partialorder %v1199, 8.507059e+37
        %v1201 = vand.u32 %v1138, 2147483648
        %v1202 = vor.u32 1.1754944e-38, %v1201
        %v1203 = vsel %vm1200, %v1202, %v1198
        %v1204 = vmul.f32 1.0, %v1203
        %v1205 = vrcp.pop %v1139
        %v1206 = vmul.f32 %v1139, %v1205
        %v1207 = vsub.f32 1.0, %v1206
        %v1208 = vmul.f32 %v1205, %v1207
        %v1209 = vadd.f32 %v1205, %v1208
        %vm1210 = vweird.f32 %v1139
        %vm1211 = vweird.f32 %v1205
        %vm1212 = vmor %vm1210, %vm1211
        %v1213 = vsel %vm1212, %v1205, %v1209
        %v1214 = vand.u32 2147483647, %v1139
        %vm1215 = vcmp.eq.f32.partialorder %v1214, 8.507059e+37
        %v1216 = vand.u32 %v1139, 2147483648
        %v1217 = vor.u32 1.1754944e-38, %v1216
        %v1218 = vsel %vm1215, %v1217, %v1213
        %v1219 = vmul.f32 1.0, %v1218
        %v1220 = vrcp.pop %v1140
        %v1221 = vmul.f32 %v1140, %v1220
        %v1222 = vsub.f32 1.0, %v1221
        %v1223 = vmul.f32 %v1220, %v1222
        %v1224 = vadd.f32 %v1220, %v1223
        %vm1225 = vweird.f32 %v1140
        %vm1226 = vweird.f32 %v1220
        %vm1227 = vmor %vm1225, %vm1226
        %v1228 = vsel %vm1227, %v1220, %v1224
        %v1229 = vand.u32 2147483647, %v1140
        %vm1230 = vcmp.eq.f32.partialorder %v1229, 8.507059e+37
        %v1231 = vand.u32 %v1140, 2147483648
        %v1232 = vor.u32 1.1754944e-38, %v1231
        %v1233 = vsel %vm1230, %v1232, %v1228
        %v1234 = vmul.f32 1.0, %v1233
        %v1235 = vrcp.pop %v1141
        %v1236 = vmul.f32 %v1141, %v1235
        %v1237 = vsub.f32 1.0, %v1236
        %v1238 = vmul.f32 %v1235, %v1237
        %v1239 = vadd.f32 %v1235, %v1238
        %vm1240 = vweird.f32 %v1141
        %vm1241 = vweird.f32 %v1235
        %vm1242 = vmor %vm1240, %vm1241
        %v1243 = vsel %vm1242, %v1235, %v1239
        %v1244 = vand.u32 2147483647, %v1141
        %vm1245 = vcmp.eq.f32.partialorder %v1244, 8.507059e+37
        %v1246 = vand.u32 %v1141, 2147483648
        %v1247 = vor.u32 1.1754944e-38, %v1246
        %v1248 = vsel %vm1245, %v1247, %v1243
        %v1249 = vmul.f32 1.0, %v1248
        %v1250 = vrcp.pop %v1142
        %v1251 = vmul.f32 %v1142, %v1250
        %v1252 = vsub.f32 1.0, %v1251
        %v1253 = vmul.f32 %v1250, %v1252
        %v1254 = vadd.f32 %v1250, %v1253
        %vm1255 = vweird.f32 %v1142
        %vm1256 = vweird.f32 %v1250
        %vm1257 = vmor %vm1255, %vm1256
        %v1258 = vsel %vm1257, %v1250, %v1254
        %v1259 = vand.u32 2147483647, %v1142
        %vm1260 = vcmp.eq.f32.partialorder %v1259, 8.507059e+37
        %v1261 = vand.u32 %v1142, 2147483648
        %v1262 = vor.u32 1.1754944e-38, %v1261
        %v1263 = vsel %vm1260, %v1262, %v1258
        %v1264 = vmul.f32 1.0, %v1263
        %v1265 = vrcp.pop %v1143
        %v1266 = vmul.f32 %v1143, %v1265
        %v1267 = vsub.f32 1.0, %v1266
        %v1268 = vmul.f32 %v1265, %v1267
        %v1269 = vadd.f32 %v1265, %v1268
        %vm1270 = vweird.f32 %v1143
        %vm1271 = vweird.f32 %v1265
        %vm1272 = vmor %vm1270, %vm1271
        %v1273 = vsel %vm1272, %v1265, %v1269
        %v1274 = vand.u32 2147483647, %v1143
        %vm1275 = vcmp.eq.f32.partialorder %v1274, 8.507059e+37
        %v1276 = vand.u32 %v1143, 2147483648
        %v1277 = vor.u32 1.1754944e-38, %v1276
        %v1278 = vsel %vm1275, %v1277, %v1273
        %v1279 = vmul.f32 1.0, %v1278
        %v1280 = vrcp.pop %v1144
        %v1281 = vmul.f32 %v1144, %v1280
        %v1282 = vsub.f32 1.0, %v1281
        %v1283 = vmul.f32 %v1280, %v1282
        %v1284 = vadd.f32 %v1280, %v1283
        %vm1285 = vweird.f32 %v1144
        %vm1286 = vweird.f32 %v1280
        %vm1287 = vmor %vm1285, %vm1286
        %v1288 = vsel %vm1287, %v1280, %v1284
        %v1289 = vand.u32 2147483647, %v1144
        %vm1290 = vcmp.eq.f32.partialorder %v1289, 8.507059e+37
        %v1291 = vand.u32 %v1144, 2147483648
        %v1292 = vor.u32 1.1754944e-38, %v1291
        %v1293 = vsel %vm1290, %v1292, %v1288
        %v1294 = vmul.f32 1.0, %v1293
        %v1295 = vld [vmem:[%s9] sm:$0xff]
        %v1296 = vld [vmem:[%s10 + $0x7] sm:$0x1]
        %v1298 = vperm.slane %v1296, 0
        %v1301 = vsel %vm851, %v708, 0
        %v1304 = vsel %vm851, %v711, 0
        %v1307 = vsel %vm851, %v714, 0
        %v1310 = vsel %vm851, %v717, 0
        %v1313 = vsel %vm851, %v720, 0
        %v1316 = vsel %vm851, %v723, 0
        %v1319 = vsel %vm851, %v726, 0
        %v1322 = vsel %vm851, %v729, 0
        %v1325 = vsel %vm851, %v732, 0
        %v1328 = vsel %vm851, %v735, 0
        %1330 = vmatpush.msra.mxu0 0.0
        %1331 = vmatpush.msra.mxu0 0.0
        %1332 = vmatpush.msra.mxu0 0.0
        %1333 = vmatpush.msra.mxu0 0.0
        %1334 = vmatpush.msra.mxu0 0.0
        %1335 = vmatpush.msra.mxu0 0.0
        %1336 = vmatpush.msra.mxu0 0.0
        %1337 = vmatpush.msra.mxu0 0.0
        %1338 = vmatpush.msra.mxu0 0.0
        %1339 = vmatpush.msra.mxu0 0.0
        %1340 = vmatpush.msra.mxu0 0.0
        %1341 = vmatpush.msra.mxu0 0.0
        %1342 = vmatpush.msra.mxu0 0.0
        %1343 = vmatpush.msra.mxu0 0.0
        %1344 = vmatpush.msra.mxu0 0.0
        %1345 = vmatpush.msra.mxu0 %v1295
        %1346 = vmatmul.f32.gmra.mxu0 %v1301
        %v1347 = vpop.f32.mrf.mxu0
        %v1348 = vadd.f32 %v1298, %v1347
        %1349 = vmatmul.f32.gmra.mxu0 %v1304
        %v1350 = vpop.f32.mrf.mxu0
        %v1351 = vadd.f32 %v1298, %v1350
        %1352 = vmatmul.f32.gmra.mxu0 %v1307
        %v1353 = vpop.f32.mrf.mxu0
        %v1354 = vadd.f32 %v1298, %v1353
        %1355 = vmatmul.f32.gmra.mxu0 %v1310
        %v1356 = vpop.f32.mrf.mxu0
        %v1357 = vadd.f32 %v1298, %v1356
        %1358 = vmatmul.f32.gmra.mxu0 %v1313
        %v1359 = vpop.f32.mrf.mxu0
        %v1360 = vadd.f32 %v1298, %v1359
        %1361 = vmatmul.f32.gmra.mxu0 %v1316
        %v1362 = vpop.f32.mrf.mxu0
        %v1363 = vadd.f32 %v1298, %v1362
        %1364 = vmatmul.f32.gmra.mxu0 %v1319
        %v1365 = vpop.f32.mrf.mxu0
        %v1366 = vadd.f32 %v1298, %v1365
        %1367 = vmatmul.f32.gmra.mxu0 %v1322
        %v1368 = vpop.f32.mrf.mxu0
        %v1369 = vadd.f32 %v1298, %v1368
        %1370 = vmatmul.f32.gmra.mxu0 %v1325
        %v1371 = vpop.f32.mrf.mxu0
        %v1372 = vadd.f32 %v1298, %v1371
        %1373 = vmatmul.f32.gmra.mxu0 %v1328
        %v1374 = vpop.f32.mrf.mxu0
        %v1375 = vadd.f32 %v1298, %v1374
        %1376 = vdwg.mxu0
        %v1377 = vmax.f32 %v1348, 0.0
        %v1378 = vmax.f32 %v1351, 0.0
        %v1379 = vmax.f32 %v1354, 0.0
        %v1380 = vmax.f32 %v1357, 0.0
        %v1381 = vmax.f32 %v1360, 0.0
        %v1382 = vmax.f32 %v1363, 0.0
        %v1383 = vmax.f32 %v1366, 0.0
        %v1384 = vmax.f32 %v1369, 0.0
        %v1385 = vmax.f32 %v1372, 0.0
        %v1386 = vmax.f32 %v1375, 0.0
        %v1387 = vld [vmem:[%s10 + $0x8] sm:$0x1]
        %v1389 = vperm.slane %v1387, 0
        %v1391 = vmul.f32 %v1377, %v1389
        %v1392 = vmul.f32 %v1378, %v1389
        %v1393 = vmul.f32 %v1379, %v1389
        %v1394 = vmul.f32 %v1380, %v1389
        %v1395 = vmul.f32 %v1381, %v1389
        %v1396 = vmul.f32 %v1382, %v1389
        %v1397 = vmul.f32 %v1383, %v1389
        %v1398 = vmul.f32 %v1384, %v1389
        %v1399 = vmul.f32 %v1385, %v1389
        %v1400 = vmul.f32 %v1386, %v1389
        %v1401 = vsel %vm482, %v1391, 0.0
        %1402 = vadd.xlane.f32.xlu0 %v1401
        %v1403 = vpop.xlane.xlu0 %1402
        %v1404 = vsel %vm482, %v1392, 0.0
        %1405 = vadd.xlane.f32.xlu0 %v1404
        %v1406 = vpop.xlane.xlu0 %1405
        %v1407 = vsel %vm482, %v1393, 0.0
        %1408 = vadd.xlane.f32.xlu0 %v1407
        %v1409 = vpop.xlane.xlu0 %1408
        %v1410 = vsel %vm482, %v1394, 0.0
        %1411 = vadd.xlane.f32.xlu0 %v1410
        %v1412 = vpop.xlane.xlu0 %1411
        %v1413 = vsel %vm482, %v1395, 0.0
        %1414 = vadd.xlane.f32.xlu0 %v1413
        %v1415 = vpop.xlane.xlu0 %1414
        %v1416 = vsel %vm482, %v1396, 0.0
        %1417 = vadd.xlane.f32.xlu0 %v1416
        %v1418 = vpop.xlane.xlu0 %1417
        %v1419 = vsel %vm482, %v1397, 0.0
        %1420 = vadd.xlane.f32.xlu0 %v1419
        %v1421 = vpop.xlane.xlu0 %1420
        %v1422 = vsel %vm482, %v1398, 0.0
        %1423 = vadd.xlane.f32.xlu0 %v1422
        %v1424 = vpop.xlane.xlu0 %1423
        %v1425 = vsel %vm482, %v1399, 0.0
        %1426 = vadd.xlane.f32.xlu0 %v1425
        %v1427 = vpop.xlane.xlu0 %1426
        %v1428 = vsel %vm482, %v1400, 0.0
        %1429 = vadd.xlane.f32.xlu0 %v1428
        %v1430 = vpop.xlane.xlu0 %1429
        %v1431 = vld [vmem:[%s10 + $0x9] sm:$0x1]
        %v1433 = vperm.slane %v1431, 0
        %v1435 = vadd.f32 %v1403, %v1433
        %v1436 = vadd.f32 %v1406, %v1433
        %v1437 = vadd.f32 %v1409, %v1433
        %v1438 = vadd.f32 %v1412, %v1433
        %v1439 = vadd.f32 %v1415, %v1433
        %v1440 = vadd.f32 %v1418, %v1433
        %v1441 = vadd.f32 %v1421, %v1433
        %v1442 = vadd.f32 %v1424, %v1433
        %v1443 = vadd.f32 %v1427, %v1433
        %v1444 = vadd.f32 %v1430, %v1433
        %v1445 = vxor.u32 %v1435, 2147483648
        %v1446 = vxor.u32 %v1436, 2147483648
        %v1447 = vxor.u32 %v1437, 2147483648
        %v1448 = vxor.u32 %v1438, 2147483648
        %v1449 = vxor.u32 %v1439, 2147483648
        %v1450 = vxor.u32 %v1440, 2147483648
        %v1451 = vxor.u32 %v1441, 2147483648
        %v1452 = vxor.u32 %v1442, 2147483648
        %v1453 = vxor.u32 %v1443, 2147483648
        %v1454 = vxor.u32 %v1444, 2147483648
        %v1455 = vmul.f32 %v1445, 1.442695
        %v1456 = vpow.pop %v1455
        %v1457 = vmul.f32 %v1446, 1.442695
        %v1458 = vpow.pop %v1457
        %v1459 = vmul.f32 %v1447, 1.442695
        %v1460 = vpow.pop %v1459
        %v1461 = vmul.f32 %v1448, 1.442695
        %v1462 = vpow.pop %v1461
        %v1463 = vmul.f32 %v1449, 1.442695
        %v1464 = vpow.pop %v1463
        %v1465 = vmul.f32 %v1450, 1.442695
        %v1466 = vpow.pop %v1465
        %v1467 = vmul.f32 %v1451, 1.442695
        %v1468 = vpow.pop %v1467
        %v1469 = vmul.f32 %v1452, 1.442695
        %v1470 = vpow.pop %v1469
        %v1471 = vmul.f32 %v1453, 1.442695
        %v1472 = vpow.pop %v1471
        %v1473 = vmul.f32 %v1454, 1.442695
        %v1474 = vpow.pop %v1473
        %v1475 = vadd.f32 %v1456, 1.0
        %v1476 = vadd.f32 %v1458, 1.0
        %v1477 = vadd.f32 %v1460, 1.0
        %v1478 = vadd.f32 %v1462, 1.0
        %v1479 = vadd.f32 %v1464, 1.0
        %v1480 = vadd.f32 %v1466, 1.0
        %v1481 = vadd.f32 %v1468, 1.0
        %v1482 = vadd.f32 %v1470, 1.0
        %v1483 = vadd.f32 %v1472, 1.0
        %v1484 = vadd.f32 %v1474, 1.0
        %v1485 = vrcp.pop %v1475
        %v1486 = vmul.f32 %v1475, %v1485
        %v1487 = vsub.f32 1.0, %v1486
        %v1488 = vmul.f32 %v1485, %v1487
        %v1489 = vadd.f32 %v1485, %v1488
        %vm1490 = vweird.f32 %v1475
        %vm1491 = vweird.f32 %v1485
        %vm1492 = vmor %vm1490, %vm1491
        %v1493 = vsel %vm1492, %v1485, %v1489
        %v1494 = vand.u32 2147483647, %v1475
        %vm1495 = vcmp.eq.f32.partialorder %v1494, 8.507059e+37
        %v1496 = vand.u32 %v1475, 2147483648
        %v1497 = vor.u32 1.1754944e-38, %v1496
        %v1498 = vsel %vm1495, %v1497, %v1493
        %v1499 = vmul.f32 1.0, %v1498
        %v1500 = vrcp.pop %v1476
        %v1501 = vmul.f32 %v1476, %v1500
        %v1502 = vsub.f32 1.0, %v1501
        %v1503 = vmul.f32 %v1500, %v1502
        %v1504 = vadd.f32 %v1500, %v1503
        %vm1505 = vweird.f32 %v1476
        %vm1506 = vweird.f32 %v1500
        %vm1507 = vmor %vm1505, %vm1506
        %v1508 = vsel %vm1507, %v1500, %v1504
        %v1509 = vand.u32 2147483647, %v1476
        %vm1510 = vcmp.eq.f32.partialorder %v1509, 8.507059e+37
        %v1511 = vand.u32 %v1476, 2147483648
        %v1512 = vor.u32 1.1754944e-38, %v1511
        %v1513 = vsel %vm1510, %v1512, %v1508
        %v1514 = vmul.f32 1.0, %v1513
        %v1515 = vrcp.pop %v1477
        %v1516 = vmul.f32 %v1477, %v1515
        %v1517 = vsub.f32 1.0, %v1516
        %v1518 = vmul.f32 %v1515, %v1517
        %v1519 = vadd.f32 %v1515, %v1518
        %vm1520 = vweird.f32 %v1477
        %vm1521 = vweird.f32 %v1515
        %vm1522 = vmor %vm1520, %vm1521
        %v1523 = vsel %vm1522, %v1515, %v1519
        %v1524 = vand.u32 2147483647, %v1477
        %vm1525 = vcmp.eq.f32.partialorder %v1524, 8.507059e+37
        %v1526 = vand.u32 %v1477, 2147483648
        %v1527 = vor.u32 1.1754944e-38, %v1526
        %v1528 = vsel %vm1525, %v1527, %v1523
        %v1529 = vmul.f32 1.0, %v1528
        %v1530 = vrcp.pop %v1478
        %v1531 = vmul.f32 %v1478, %v1530
        %v1532 = vsub.f32 1.0, %v1531
        %v1533 = vmul.f32 %v1530, %v1532
        %v1534 = vadd.f32 %v1530, %v1533
        %vm1535 = vweird.f32 %v1478
        %vm1536 = vweird.f32 %v1530
        %vm1537 = vmor %vm1535, %vm1536
        %v1538 = vsel %vm1537, %v1530, %v1534
        %v1539 = vand.u32 2147483647, %v1478
        %vm1540 = vcmp.eq.f32.partialorder %v1539, 8.507059e+37
        %v1541 = vand.u32 %v1478, 2147483648
        %v1542 = vor.u32 1.1754944e-38, %v1541
        %v1543 = vsel %vm1540, %v1542, %v1538
        %v1544 = vmul.f32 1.0, %v1543
        %v1545 = vrcp.pop %v1479
        %v1546 = vmul.f32 %v1479, %v1545
        %v1547 = vsub.f32 1.0, %v1546
        %v1548 = vmul.f32 %v1545, %v1547
        %v1549 = vadd.f32 %v1545, %v1548
        %vm1550 = vweird.f32 %v1479
        %vm1551 = vweird.f32 %v1545
        %vm1552 = vmor %vm1550, %vm1551
        %v1553 = vsel %vm1552, %v1545, %v1549
        %v1554 = vand.u32 2147483647, %v1479
        %vm1555 = vcmp.eq.f32.partialorder %v1554, 8.507059e+37
        %v1556 = vand.u32 %v1479, 2147483648
        %v1557 = vor.u32 1.1754944e-38, %v1556
        %v1558 = vsel %vm1555, %v1557, %v1553
        %v1559 = vmul.f32 1.0, %v1558
        %v1560 = vrcp.pop %v1480
        %v1561 = vmul.f32 %v1480, %v1560
        %v1562 = vsub.f32 1.0, %v1561
        %v1563 = vmul.f32 %v1560, %v1562
        %v1564 = vadd.f32 %v1560, %v1563
        %vm1565 = vweird.f32 %v1480
        %vm1566 = vweird.f32 %v1560
        %vm1567 = vmor %vm1565, %vm1566
        %v1568 = vsel %vm1567, %v1560, %v1564
        %v1569 = vand.u32 2147483647, %v1480
        %vm1570 = vcmp.eq.f32.partialorder %v1569, 8.507059e+37
        %v1571 = vand.u32 %v1480, 2147483648
        %v1572 = vor.u32 1.1754944e-38, %v1571
        %v1573 = vsel %vm1570, %v1572, %v1568
        %v1574 = vmul.f32 1.0, %v1573
        %v1575 = vrcp.pop %v1481
        %v1576 = vmul.f32 %v1481, %v1575
        %v1577 = vsub.f32 1.0, %v1576
        %v1578 = vmul.f32 %v1575, %v1577
        %v1579 = vadd.f32 %v1575, %v1578
        %vm1580 = vweird.f32 %v1481
        %vm1581 = vweird.f32 %v1575
        %vm1582 = vmor %vm1580, %vm1581
        %v1583 = vsel %vm1582, %v1575, %v1579
        %v1584 = vand.u32 2147483647, %v1481
        %vm1585 = vcmp.eq.f32.partialorder %v1584, 8.507059e+37
        %v1586 = vand.u32 %v1481, 2147483648
        %v1587 = vor.u32 1.1754944e-38, %v1586
        %v1588 = vsel %vm1585, %v1587, %v1583
        %v1589 = vmul.f32 1.0, %v1588
        %v1590 = vrcp.pop %v1482
        %v1591 = vmul.f32 %v1482, %v1590
        %v1592 = vsub.f32 1.0, %v1591
        %v1593 = vmul.f32 %v1590, %v1592
        %v1594 = vadd.f32 %v1590, %v1593
        %vm1595 = vweird.f32 %v1482
        %vm1596 = vweird.f32 %v1590
        %vm1597 = vmor %vm1595, %vm1596
        %v1598 = vsel %vm1597, %v1590, %v1594
        %v1599 = vand.u32 2147483647, %v1482
        %vm1600 = vcmp.eq.f32.partialorder %v1599, 8.507059e+37
        %v1601 = vand.u32 %v1482, 2147483648
        %v1602 = vor.u32 1.1754944e-38, %v1601
        %v1603 = vsel %vm1600, %v1602, %v1598
        %v1604 = vmul.f32 1.0, %v1603
        %v1605 = vrcp.pop %v1483
        %v1606 = vmul.f32 %v1483, %v1605
        %v1607 = vsub.f32 1.0, %v1606
        %v1608 = vmul.f32 %v1605, %v1607
        %v1609 = vadd.f32 %v1605, %v1608
        %vm1610 = vweird.f32 %v1483
        %vm1611 = vweird.f32 %v1605
        %vm1612 = vmor %vm1610, %vm1611
        %v1613 = vsel %vm1612, %v1605, %v1609
        %v1614 = vand.u32 2147483647, %v1483
        %vm1615 = vcmp.eq.f32.partialorder %v1614, 8.507059e+37
        %v1616 = vand.u32 %v1483, 2147483648
        %v1617 = vor.u32 1.1754944e-38, %v1616
        %v1618 = vsel %vm1615, %v1617, %v1613
        %v1619 = vmul.f32 1.0, %v1618
        %v1620 = vrcp.pop %v1484
        %v1621 = vmul.f32 %v1484, %v1620
        %v1622 = vsub.f32 1.0, %v1621
        %v1623 = vmul.f32 %v1620, %v1622
        %v1624 = vadd.f32 %v1620, %v1623
        %vm1625 = vweird.f32 %v1484
        %vm1626 = vweird.f32 %v1620
        %vm1627 = vmor %vm1625, %vm1626
        %v1628 = vsel %vm1627, %v1620, %v1624
        %v1629 = vand.u32 2147483647, %v1484
        %vm1630 = vcmp.eq.f32.partialorder %v1629, 8.507059e+37
        %v1631 = vand.u32 %v1484, 2147483648
        %v1632 = vor.u32 1.1754944e-38, %v1631
        %v1633 = vsel %vm1630, %v1632, %v1628
        %v1634 = vmul.f32 1.0, %v1633
        %1636 = vset.pattern.permute.xlu0 0
        %1637 = vperm.xlu0 %1636, %v1499
        %v1638 = vpop.permute.xlu0 %1637
        %1641 = vset.pattern.permute.xlu0 0
        %1642 = vperm.xlu0 %1641, %v1514
        %v1643 = vpop.permute.xlu0 %1642
        %1646 = vset.pattern.permute.xlu0 0
        %1647 = vperm.xlu0 %1646, %v1529
        %v1648 = vpop.permute.xlu0 %1647
        %1651 = vset.pattern.permute.xlu0 0
        %1652 = vperm.xlu0 %1651, %v1544
        %v1653 = vpop.permute.xlu0 %1652
        %1656 = vset.pattern.permute.xlu0 0
        %1657 = vperm.xlu0 %1656, %v1559
        %v1658 = vpop.permute.xlu0 %1657
        %1661 = vset.pattern.permute.xlu0 0
        %1662 = vperm.xlu0 %1661, %v1574
        %v1663 = vpop.permute.xlu0 %1662
        %1666 = vset.pattern.permute.xlu0 0
        %1667 = vperm.xlu0 %1666, %v1589
        %v1668 = vpop.permute.xlu0 %1667
        %1671 = vset.pattern.permute.xlu0 0
        %1672 = vperm.xlu0 %1671, %v1604
        %v1673 = vpop.permute.xlu0 %1672
        %1676 = vset.pattern.permute.xlu0 0
        %1677 = vperm.xlu0 %1676, %v1619
        %v1678 = vpop.permute.xlu0 %1677
        %1681 = vset.pattern.permute.xlu0 0
        %1682 = vperm.xlu0 %1681, %v1634
        %v1683 = vpop.permute.xlu0 %1682
        %1685 = vrot.lane.b32.xlu0 %v708, 32
        %v1686 = vpop.permute.xlu0 %1685
        %1687 = vrot.lane.b32.xlu0 %v711, 32
        %v1688 = vpop.permute.xlu0 %1687
        %1689 = vrot.lane.b32.xlu0 %v714, 32
        %v1690 = vpop.permute.xlu0 %1689
        %1691 = vrot.lane.b32.xlu0 %v717, 32
        %v1692 = vpop.permute.xlu0 %1691
        %1693 = vrot.lane.b32.xlu0 %v720, 32
        %v1694 = vpop.permute.xlu0 %1693
        %1695 = vrot.lane.b32.xlu0 %v723, 32
        %v1696 = vpop.permute.xlu0 %1695
        %1697 = vrot.lane.b32.xlu0 %v726, 32
        %v1698 = vpop.permute.xlu0 %1697
        %1699 = vrot.lane.b32.xlu0 %v729, 32
        %v1700 = vpop.permute.xlu0 %1699
        %1701 = vrot.lane.b32.xlu0 %v732, 32
        %v1702 = vpop.permute.xlu0 %1701
        %1703 = vrot.lane.b32.xlu0 %v735, 32
        %v1704 = vpop.permute.xlu0 %1703
        %1725 = vrot.lane.b32.xlu0 %v767, 40
        %v1726 = vpop.permute.xlu0 %1725
        %1727 = vrot.lane.b32.xlu0 %v770, 40
        %v1728 = vpop.permute.xlu0 %1727
        %1729 = vrot.lane.b32.xlu0 %v773, 40
        %v1730 = vpop.permute.xlu0 %1729
        %1731 = vrot.lane.b32.xlu0 %v776, 40
        %v1732 = vpop.permute.xlu0 %1731
        %1733 = vrot.lane.b32.xlu0 %v779, 40
        %v1734 = vpop.permute.xlu0 %1733
        %1735 = vrot.lane.b32.xlu0 %v782, 40
        %v1736 = vpop.permute.xlu0 %1735
        %1737 = vrot.lane.b32.xlu0 %v785, 40
        %v1738 = vpop.permute.xlu0 %1737
        %1739 = vrot.lane.b32.xlu0 %v788, 40
        %v1740 = vpop.permute.xlu0 %1739
        %1741 = vrot.lane.b32.xlu0 %v791, 40
        %v1742 = vpop.permute.xlu0 %1741
        %1743 = vrot.lane.b32.xlu0 %v794, 40
        %v1744 = vpop.permute.xlu0 %1743
        %v1755 = vsel %vm482, %v1159, %v1686
        %v1756 = vsel %vm482, %v1174, %v1688
        %v1757 = vsel %vm482, %v1189, %v1690
        %v1758 = vsel %vm482, %v1204, %v1692
        %v1759 = vsel %vm482, %v1219, %v1694
        %v1760 = vsel %vm482, %v1234, %v1696
        %v1761 = vsel %vm482, %v1249, %v1698
        %v1762 = vsel %vm482, %v1264, %v1700
        %v1763 = vsel %vm482, %v1279, %v1702
        %v1764 = vsel %vm482, %v1294, %v1704
        %vm1765 = vcmask 326656
        %v1766 = vsel %vm1765, %v1755, %v1726
        %v1767 = vsel %vm1765, %v1756, %v1728
        %v1768 = vsel %vm1765, %v1757, %v1730
        %v1769 = vsel %vm1765, %v1758, %v1732
        %v1770 = vsel %vm1765, %v1759, %v1734
        %v1771 = vsel %vm1765, %v1760, %v1736
        %v1772 = vsel %vm1765, %v1761, %v1738
        %v1773 = vsel %vm1765, %v1762, %v1740
        %v1774 = vsel %vm1765, %v1763, %v1742
        %v1775 = vsel %vm1765, %v1764, %v1744
        %vm1776 = vcmask 392192
        %v1777 = vsel %vm1776, %v1766, %v1638
        %v1778 = vsel %vm1776, %v1767, %v1643
        %v1779 = vsel %vm1776, %v1768, %v1648
        %v1780 = vsel %vm1776, %v1769, %v1653
        %v1781 = vsel %vm1776, %v1770, %v1658
        %v1782 = vsel %vm1776, %v1771, %v1663
        %v1783 = vsel %vm1776, %v1772, %v1668
        %v1784 = vsel %vm1776, %v1773, %v1673
        %v1785 = vsel %vm1776, %v1774, %v1678
        %v1786 = vsel %vm1776, %v1775, %v1683
        %1787 = vst [vmem:[%s420] sm:$0xff] %v1777
        %1788 = vst [vmem:[%s420 + $0x8] sm:$0xff] %v1778
        %1789 = vst [vmem:[%s420 + $0x10] sm:$0xff] %v1779
        %1790 = vst [vmem:[%s420 + $0x18] sm:$0xff] %v1780
        %1791 = vst [vmem:[%s420 + $0x20] sm:$0xff] %v1781
        %1792 = vst [vmem:[%s420 + $0x28] sm:$0xff] %v1782
        %1793 = vst [vmem:[%s420 + $0x30] sm:$0xff] %v1783
        %1794 = vst [vmem:[%s420 + $0x38] sm:$0xff] %v1784
        %1795 = vst [vmem:[%s420 + $0x40] sm:$0xff] %v1785
        %1796 = vst [vmem:[%s420 + $0x48] sm:$0xff] %v1786
        %s1797 = sand.u32 %s274, 1
        %s1798 = scalar_lea.sflag [#allocation3], %s1797
        %s1799 = sand.u32 %s274, 1
        %s1800 = smul.addr %s1799, 80
        %s1801 = scalar_lea.vmem [#allocation2], %s1800
        // Predicated region
        $region65: #{tpu_custom_call.1} parent=63 // pred_check
          %p1802 = pneg %p284
        $region66: #{tpu_custom_call.1} parent=63 // pred_check_branch
          %1804 = sbr.rel (%p1802) target = $region68
        $region67: #{tpu_custom_call.1} parent=63 // pred_region
          %s1805 = smul.u32 10, %s25
          %s1806 = ssub.s32 34, %s1805
          %p1807 = scmp.lt.s32.totalorder %s1806, 10
          %s1808 = scalar_select %p1807, %s1806, 10
          %s1809 = smul.u32 8, %s1808
          %s1810 = ssub.s32 80, %s1809
          %s1811 = sshll.u32 %s1810, 4
          %1812 = vsyncadd %s1798, %s1811
          %p1813 = scmp.ne.s32.totalorder 0, %s1809
          %s1814 = smul.addr %s1805, 8
          %s1815 = scalar_lea.hbm %s11, %s1814
          %s1816 = smul.u32 8, %s1808
          %s1817 = sshll.u32 %s1801, 4
          %s1818 = int_to_ptr.vmem [resolvable:$true] %s1817
          %s1819 = sshll.u32 %s1815, 4
          %s1820 = int_to_ptr.hbm [resolvable:$true] %s1819
          %s1821 = sshll.u32 %s1816, 4
          %1825 = dma.vmem_to_hbm [thread:$0]  (%p1813), %s1818, %s1821, %s1820, %s1798, 128, 128, 8
        $region68: #{tpu_custom_call.1} parent=63 // pred_fallthru
          _
      $region64: #{tpu_custom_call.1} parent=5 // pred_fallthru
        _
      %p1826 = scmp.le.s32.totalorder 2, %s20
      // Predicated region
      $region69: #{tpu_custom_call.1} parent=5 // pred_check
        %p1827 = pneg %p1826
      $region70: #{tpu_custom_call.1} parent=5 // pred_check_branch
        %1829 = sbr.rel (%p1827) target = $region72
      $region71: #{tpu_custom_call.1} parent=5 // pred_region
        %s1830 = ssub.s32 %s20, 2
        // Predicated region
        $region73: #{tpu_custom_call.1} parent=71 // pred_check
          %p1831 = pneg %p290
        $region74: #{tpu_custom_call.1} parent=71 // pred_check_branch
          %1833 = sbr.rel (%p1831) target = $region76
        $region75: #{tpu_custom_call.1} parent=71 // pred_region
          %s1834 = sand.u32 %s275, 1
          %s1835 = scalar_lea.sflag [#allocation3], %s1834
          %s1836 = sand.u32 %s275, 1
          %s1837 = smul.addr %s1836, 80
          %s1838 = scalar_lea.vmem [#allocation2], %s1837
          %1840 = dma.done %s1835, 1280
        $region76: #{tpu_custom_call.1} parent=71 // pred_fallthru
          _
      $region72: #{tpu_custom_call.1} parent=5 // pred_fallthru
        _
    $region6: #{tpu_custom_call.1} parent=1 // loop_footer
      %s24 = sadd.s32 1, %s20
    $region7: #{tpu_custom_call.1} parent=1 // loop_footer_branch
      %19 = sbr.rel target = $region3
    $region8: #{tpu_custom_call.1} parent=1 // loop_exit
      _
    %1841 = vsyncpa [#allocation3], 1
    %s1842 = scalar_lea.sflag [#allocation3], 1
    %1843 = vsyncpa %s1842, 1

</llo_original>
